<compile_context>
chip_gen: v6e
topology: v6e:2x2x1
jax: 0.10.0
libtpu: 0.0.40
codegen_flags: <defaults>
</compile_context>

<pallas_src>
import math

import jax
import jax.numpy as jnp
from jax import lax
from jax.experimental import pallas as pl
from jax.experimental.pallas import tpu as pltpu


# Plain Python floats: jnp scalars here made the kernel close over traced constants,
# which pallas_call rejects ("captures constants"). Literals are inlined instead.
_MASK_FILL = -1.0e10      # matches torch masked_fill(mask == 0, -1e10)
_PAD_FILL = -3.0e38       # ~f32 min: exp() underflows to exactly 0 for padded lanes


def _round_up(x, m):
    return -(-int(x) // int(m)) * int(m)


def _vmem_capacity_bytes():
    """Generation-aware VMEM capacity; falls back to the smallest (v7x: 64 MiB / TC)."""
    try:
        info = pltpu.get_tpu_info()
        for name in ("vmem_capacity_bytes", "vmem_bytes", "vmem_size_bytes"):
            cap = getattr(info, name, None)
            if cap:
                return int(cap)
    except Exception:
        pass
    return 64 * 1024 * 1024


def attention_kernel(hidden_ref, enc_ref, wh_ref, we_ref, bias_ref, v_ref,
                     mask_ref, out_ref):
    S, TB, E = enc_ref.shape          # encoder block is seq-major: [S, TB, E]
    Dout = we_ref.shape[1]
    S_pad = out_ref.shape[1]
    f32 = jnp.float32

    # Hidden-side projection (+ bias), shared across all S positions: [TB, Dout] f32.
    h_proj = jnp.dot(hidden_ref[...], wh_ref[...],
                     preferred_element_type=f32,
                     precision=lax.Precision.HIGHEST) + bias_ref[...]

    # Encoder-side projection as one dense 2D MXU matmul.  TB is a multiple of 8 so the
    # leading-dim merge is a pure layout no-op: [S*TB, E] @ [E, Dout] -> f32 accumulate.
    # (enc / we may be bf16: half the HBM-stream and MXU-input bytes.)
    enc2d = enc_ref[...].reshape(S * TB, E)
    e_proj = jnp.dot(enc2d, we_ref[...],
                     preferred_element_type=f32,
                     precision=lax.Precision.HIGHEST)

    # energy = tanh(W_h h + W_e enc + b): [S, TB, Dout].  Kept f32 so the same kernel is
    # correct on v5e (no bf16 VPU/EUP); bf16 tanh on v6e/v7x would need a bundle dump.
    energy = jnp.tanh(e_proj.reshape(S, TB, Dout) + h_proj[None, :, :])

    # scores[s, b] = <v, energy[s, b, :]> on the MXU (frees VPU/XLU slots — review item).
    # Only the tiny [S, TB] score matrix is ever transposed, never the big tensor.
    scores = jnp.dot(energy.reshape(S * TB, Dout), v_ref[...],
                     preferred_element_type=f32,
                     precision=lax.Precision.HIGHEST).reshape(S, TB)
    scores = scores.T                                               # [TB, S]

    # Widen once to the lane-dense output width, then apply:
    #   * mask (padded to S_pad with zeros in the wrapper) == 0 -> -1e10
    #   * lane-padding columns (col >= S)                       -> ~f32-min (exp == 0)
    if S_pad > S:
        scores = jnp.concatenate(
            [scores, jnp.zeros((TB, S_pad - S), dtype=f32)], axis=1)  # [TB, S_pad]
    scores = jnp.where(mask_ref[...] != 0, scores, _MASK_FILL)
    if S_pad > S:
        col = lax.broadcasted_iota(jnp.int32, (TB, S_pad), 1)
        scores = jnp.where(col < S, scores, _PAD_FILL)

    # Row softmax over src_len (f32).
    m = jnp.max(scores, axis=1, keepdims=True)
    e = jnp.exp(scores - m)
    denom = jnp.sum(e, axis=1, keepdims=True)
    out_ref[...] = (e / denom).astype(out_ref.dtype)


def attention_forward(hidden, encoder_outputs, mask, w, b, v, *, batch_tile=None):
    """hidden [B, D] float, encoder_outputs [S, B, E] float (seq-major), mask [B, S],
    w [Dout, D+E] (nn.Linear weight), b [Dout], v [Dout]  ->  [B, S] float32.

    hidden / encoder_outputs are streamed in their native dtype (f32 or bf16).  The
    kernel is HBM-bandwidth bound, so bf16 callers halve the dominant stream; no force
    cast (up or down) of the [S, B, E] tensor is done in this wrapper.
    """
    S, B, E = encoder_outputs.shape
    D = hidden.shape[1]
    Dout = w.shape[0]
    assert w.shape[1] == D + E, "attn weight must have in_features = dec_hid + enc_hid"
    f32 = jnp.float32

    enc = encoder_outputs
    hid = hidden
    if not jnp.issubdtype(enc.dtype, jnp.floating):
        enc = enc.astype(f32)
    if not jnp.issubdtype(hid.dtype, jnp.floating):
        hid = hid.astype(f32)
    mask_i = mask.astype(jnp.int32)

    # Split the concat-Linear weight into its hidden / encoder parts (mathematically
    # identical to cat+Linear); pre-transpose so the kernel does row-major matmuls.
    # Weights are tiny — cast them to the stream dtypes for the MXU.
    wh = jnp.transpose(w[:, :D]).astype(hid.dtype)     # [D, Dout]
    we = jnp.transpose(w[:, D:]).astype(enc.dtype)     # [E, Dout]
    bias2 = b.reshape(1, Dout).astype(f32)
    v_col = v.reshape(Dout, 1).astype(f32)             # column for the MXU v-dot

    # Lane-dense output / mask: softmax axis padded to a multiple of 128.
    S_pad = _round_up(S, 128)

    # ---- VMEM-budgeted batch tile, (8,128) tile padding accounted for. ----
    enc_bpe = jnp.dtype(enc.dtype).itemsize
    hid_bpe = jnp.dtype(hid.dtype).itemsize
    E_l = _round_up(E, 128)
    D_l = _round_up(D, 128)
    Do_l = _round_up(Dout, 128)

    vmem_cap = _vmem_capacity_bytes()
    tile_budget = int(0.40 * vmem_cap)   # per-step blocks; leaves headroom for scratch

    # Per-batch-row bytes: double-buffered streamed blocks + f32 temporaries, all padded
    # to (8, 128) tiles on their last two dims.
    bytes_per_row = (
        2 * S * E_l * enc_bpe            # encoder block (double buffered)
        + 2 * D_l * hid_bpe              # hidden block
        + 2 * S_pad * 4                  # mask block (int32)
        + 2 * S_pad * 4                  # output block
        + 4 * (3 * S * Do_l              # e_proj / energy / slack (f32)
               + S * 128                 # (S*TB, 1) v-dot result, lane padded
               + Do_l                    # h_proj row
               + 3 * S_pad))             # score / softmax temporaries
    weight_bytes = 2 * (_round_up(D, 8) * Do_l * hid_bpe
                        + _round_up(E, 8) * Do_l * enc_bpe
                        + 8 * Do_l * 4                    # bias (1, Dout)
                        + _round_up(Dout, 8) * 128 * 4)   # v column (Dout, 1)

    if batch_tile is None:
        TB = ((tile_budget - weight_bytes) // max(bytes_per_row, 1)) // 8 * 8
        TB = max(8, TB)
        TB = min(TB, _round_up(B, 8))
        if B >= 16:
            # Keep >= 2 grid steps so both of v7x's TensorCores get a share of the
            # "parallel" batch axis (one extra ~0.35us step is free on 1-TC chips).
            TB = min(TB, _round_up(-(-B // 2), 8))
    else:
        TB = max(8, (int(batch_tile) // 8) * 8)
        TB = min(TB, _round_up(B, 8))

    grid_steps = -(-B // TB)
    B_pad = grid_steps * TB

    # Only the tiny [B, *] tensors are ever padded; the dominant [S, B, E] tensor is
    # streamed as-is.  A ragged last batch block reads past B — those rows carry a zero
    # mask (padded below), so any garbage is masked to -1e10 and sliced off at the end.
    if B_pad != B:
        hid = jnp.pad(hid, ((0, B_pad - B), (0, 0)))
    if B_pad != B or S_pad != S:
        mask_i = jnp.pad(mask_i, ((0, B_pad - B), (0, S_pad - S)))

    vmem_est = TB * bytes_per_row + weight_bytes
    vmem_limit = int(min(max(2 * vmem_est, 32 * 1024 * 1024), int(0.85 * vmem_cap)))

    out = pl.pallas_call(
        attention_kernel,
        out_shape=jax.ShapeDtypeStruct((B_pad, S_pad), f32),
        grid_spec=pltpu.PrefetchScalarGridSpec(
            num_scalar_prefetch=0,
            grid=(grid_steps,),
            in_specs=[
                pl.BlockSpec((TB, D), lambda i: (i, 0)),        # hidden
                pl.BlockSpec((S, TB, E), lambda i: (0, i, 0)),  # encoder_outputs (seq-major)
                pl.BlockSpec((D, Dout), lambda i: (0, 0)),      # wh   (VMEM-resident)
                pl.BlockSpec((E, Dout), lambda i: (0, 0)),      # we   (VMEM-resident)
                pl.BlockSpec((1, Dout), lambda i: (0, 0)),      # bias (VMEM-resident)
                pl.BlockSpec((Dout, 1), lambda i: (0, 0)),      # v column (VMEM-resident)
                pl.BlockSpec((TB, S_pad), lambda i: (i, 0)),    # mask (lane-dense)
            ],
            out_specs=pl.BlockSpec((TB, S_pad), lambda i: (i, 0)),
        ),
        compiler_params=pltpu.CompilerParams(
            dimension_semantics=("parallel",),
            vmem_limit_bytes=vmem_limit,
        ),
    )(hid, enc, wh, we, bias2, v_col, mask_i)

    return out[:B, :S]


def _reference(hidden, encoder_outputs, mask, w, b, v):
    """Pure-JAX reference mirroring the PyTorch code path (f32, HIGHEST precision)."""
    S = encoder_outputs.shape[0]
    h = jnp.repeat(hidden[:, None, :], S, axis=1)                     # [B, S, D]
    enc = jnp.transpose(encoder_outputs, (1, 0, 2))                   # [B, S, E]
    cat = jnp.concatenate([h, enc], axis=2)                           # [B, S, D+E]
    energy = jnp.tanh(jnp.einsum('bsf,df->bsd', cat, w,
                                 precision=lax.Precision.HIGHEST) + b)
    scores = jnp.einsum('bsd,d->bs', energy, v,
                        precision=lax.Precision.HIGHEST)              # [B, S]
    scores = jnp.where(mask == 0, -1.0e10, scores)
    return jax.nn.softmax(scores, axis=1)


if __name__ == "__main__":
    enc_hid_dim = 32
    dec_hid_dim = 32
    B, S = 2, 8

    key = jax.random.PRNGKey(0)
    k1, k2, k3, k4, k5, k6 = jax.random.split(key, 6)

    hidden = jax.random.normal(k1, (B, dec_hid_dim), dtype=jnp.float32)
    encoder_outputs = jax.random.normal(k2, (S, B, enc_hid_dim), dtype=jnp.float32)
    mask = (jax.random.uniform(k3, (B, S)) > 0.3).astype(jnp.int32)
    mask = mask.at[:, 0].set(1)  # guarantee at least one unmasked position per row

    fan_in = enc_hid_dim + dec_hid_dim
    bound = 1.0 / math.sqrt(fan_in)
    w = jax.random.uniform(k4, (dec_hid_dim, fan_in), minval=-bound, maxval=bound,
                           dtype=jnp.float32)
    b = jax.random.uniform(k5, (dec_hid_dim,), minval=-bound, maxval=bound,
                           dtype=jnp.float32)
    v = jax.random.uniform(k6, (dec_hid_dim,), dtype=jnp.float32)

    out = jax.block_until_ready(attention_forward(hidden, encoder_outputs, mask, w, b, v))
    ref = _reference(hidden, encoder_outputs, mask, w, b, v)
    assert out.shape == (B, S)
    assert jnp.allclose(out, ref, rtol=1e-4, atol=2e-5), "mismatch vs reference (f32)"
    assert jnp.allclose(jnp.sum(out, axis=1), 1.0, atol=1e-5)

    # Ragged batch + multi-step grid: B not a multiple of the tile; encoder NOT padded.
    B2, S2 = 10, 24
    kb1, kb2, kb3 = jax.random.split(jax.random.PRNGKey(1), 3)
    hidden2 = jax.random.normal(kb1, (B2, dec_hid_dim), dtype=jnp.float32)
    enc2 = jax.random.normal(kb2, (S2, B2, enc_hid_dim), dtype=jnp.float32)
    mask2 = (jax.random.uniform(kb3, (B2, S2)) > 0.3).astype(jnp.int32)
    mask2 = mask2.at[:, 0].set(1)
    out2 = jax.block_until_ready(
        attention_forward(hidden2, enc2, mask2, w, b, v, batch_tile=8))
    ref2 = _reference(hidden2, enc2, mask2, w, b, v)
    assert jnp.allclose(out2, ref2, rtol=1e-4, atol=2e-5), "mismatch (ragged tiled grid)"

    # bf16 streaming path (halves HBM bytes of the dominant [S, B, E] stream).
    B3, S3 = 16, 40
    kc1, kc2, kc3 = jax.random.split(jax.random.PRNGKey(2), 3)
    hidden3 = jax.random.normal(kc1, (B3, dec_hid_dim),
                                dtype=jnp.float32).astype(jnp.bfloat16)
    enc3 = jax.random.normal(kc2, (S3, B3, enc_hid_dim),
                             dtype=jnp.float32).astype(jnp.bfloat16)
    mask3 = (jax.random.uniform(kc3, (B3, S3)) > 0.3).astype(jnp.int32)
    mask3 = mask3.at[:, 0].set(1)
    out3 = jax.block_until_ready(attention_forward(hidden3, enc3, mask3, w, b, v))
    ref3 = _reference(hidden3.astype(jnp.float32), enc3.astype(jnp.float32),
                      mask3, w, b, v)
    assert jnp.allclose(out3, ref3, rtol=2e-2, atol=2e-2), "mismatch (bf16 stream)"

    print("KERNEL_OK")
</pallas_src>

<mosaic_0001>
module attributes {stable_mosaic.version = 11 : i64} {
  func.func @attention_kernel(%arg0: i32, %arg1: memref<8x32xf32, #tpu.memory_space<vmem>>, %arg2: memref<8x8x32xf32, #tpu.memory_space<vmem>>, %arg3: memref<32x32xf32, #tpu.memory_space<vmem>>, %arg4: memref<32x32xf32, #tpu.memory_space<vmem>>, %arg5: memref<1x32xf32, #tpu.memory_space<vmem>>, %arg6: memref<32x1xf32, #tpu.memory_space<vmem>>, %arg7: memref<8x128xi32, #tpu.memory_space<vmem>>, %arg8: memref<8x128xf32, #tpu.memory_space<vmem>>) attributes {dimension_semantics = [#tpu.dimension_semantics<parallel>], iteration_bounds = array<i64: 1>, scalar_prefetch = 0 : i64, scratch_operands = 0 : i64, tpu.core_type = #tpu.core_type<tc>, window_params = [{transform_indices = @transform_0, window_bounds = array<i64: 8, 32>}, {transform_indices = @transform_1, window_bounds = array<i64: 8, 8, 32>}, {pipeline_mode = #tpu.pipeline_mode<synchronous>, transform_indices = @transform_2, window_bounds = array<i64: 32, 32>}, {pipeline_mode = #tpu.pipeline_mode<synchronous>, transform_indices = @transform_3, window_bounds = array<i64: 32, 32>}, {pipeline_mode = #tpu.pipeline_mode<synchronous>, transform_indices = @transform_4, window_bounds = array<i64: 1, 32>}, {pipeline_mode = #tpu.pipeline_mode<synchronous>, transform_indices = @transform_5, window_bounds = array<i64: 32, 1>}, {transform_indices = @transform_6, window_bounds = array<i64: 8, 128>}, {transform_indices = @transform_7, window_bounds = array<i64: 8, 128>}]} {
    %c0 = arith.constant 0 : index
    %c0_0 = arith.constant 0 : index
    %0 = vector.load %arg1[%c0, %c0_0] : memref<8x32xf32, #tpu.memory_space<vmem>>, vector<8x32xf32>
    %c0_1 = arith.constant 0 : index
    %c0_2 = arith.constant 0 : index
    %1 = vector.load %arg3[%c0_1, %c0_2] : memref<32x32xf32, #tpu.memory_space<vmem>>, vector<32x32xf32>
    %cst = arith.constant dense<0.000000e+00> : vector<8x32xf32>
    %2 = tpu.matmul %0, %1, %cst {dimension_numbers = #tpu.dot_dimension_numbers<[1], [0], [0], [1], [0, 0, 1, 1], [], []>, precision = #tpu.contract_precision<fp32>} : vector<8x32xf32>, vector<32x32xf32>, vector<8x32xf32> -> vector<8x32xf32>
    %c0_3 = arith.constant 0 : index
    %c0_4 = arith.constant 0 : index
    %3 = vector.load %arg5[%c0_3, %c0_4] : memref<1x32xf32, #tpu.memory_space<vmem>>, vector<1x32xf32>
    %4 = vector.broadcast %3 : vector<1x32xf32> to vector<8x32xf32>
    %5 = arith.addf %2, %4 : vector<8x32xf32>
    %c0_5 = arith.constant 0 : index
    %c0_6 = arith.constant 0 : index
    %c0_7 = arith.constant 0 : index
    %6 = vector.load %arg2[%c0_5, %c0_6, %c0_7] : memref<8x8x32xf32, #tpu.memory_space<vmem>>, vector<8x8x32xf32>
    %7 = vector.shape_cast %6 : vector<8x8x32xf32> to vector<64x32xf32>
    %c0_8 = arith.constant 0 : index
    %c0_9 = arith.constant 0 : index
    %8 = vector.load %arg4[%c0_8, %c0_9] : memref<32x32xf32, #tpu.memory_space<vmem>>, vector<32x32xf32>
    %cst_10 = arith.constant dense<0.000000e+00> : vector<64x32xf32>
    %9 = tpu.matmul %7, %8, %cst_10 {dimension_numbers = #tpu.dot_dimension_numbers<[1], [0], [0], [1], [0, 0, 1, 1], [], []>, precision = #tpu.contract_precision<fp32>} : vector<64x32xf32>, vector<32x32xf32>, vector<64x32xf32> -> vector<64x32xf32>
    %10 = vector.shape_cast %9 : vector<64x32xf32> to vector<8x8x32xf32>
    %11 = vector.shape_cast %5 : vector<8x32xf32> to vector<1x8x32xf32>
    %12 = vector.broadcast %11 : vector<1x8x32xf32> to vector<8x8x32xf32>
    %13 = arith.addf %10, %12 : vector<8x8x32xf32>
    %14 = math.tanh %13 : vector<8x8x32xf32>
    %15 = vector.shape_cast %14 : vector<8x8x32xf32> to vector<64x32xf32>
    %c0_11 = arith.constant 0 : index
    %c0_12 = arith.constant 0 : index
    %16 = vector.load %arg6[%c0_11, %c0_12] : memref<32x1xf32, #tpu.memory_space<vmem>>, vector<32x1xf32>
    %cst_13 = arith.constant dense<0.000000e+00> : vector<64x1xf32>
    %17 = tpu.matmul %15, %16, %cst_13 {dimension_numbers = #tpu.dot_dimension_numbers<[1], [0], [0], [1], [0, 0, 1, 1], [], []>, precision = #tpu.contract_precision<fp32>} : vector<64x32xf32>, vector<32x1xf32>, vector<64x1xf32> -> vector<64x1xf32>
    %18 = vector.shape_cast %17 : vector<64x1xf32> to vector<8x8xf32>
    %19 = tpu.transpose %18, [1, 0] : vector<8x8xf32> -> vector<8x8xf32>
    %cst_14 = arith.constant 0.000000e+00 : f32
    %20 = vector.broadcast %cst_14 : f32 to vector<8x120xf32>
    %21 = tpu.concatenate %19, %20 in 1 : vector<8x8xf32>, vector<8x120xf32> -> vector<8x128xf32>
    %c0_15 = arith.constant 0 : index
    %c0_16 = arith.constant 0 : index
    %22 = vector.load %arg7[%c0_15, %c0_16] : memref<8x128xi32, #tpu.memory_space<vmem>>, vector<8x128xi32>
    %c0_i32 = arith.constant 0 : i32
    %23 = vector.broadcast %c0_i32 : i32 to vector<8x128xi32>
    %24 = arith.cmpi ne, %22, %23 : vector<8x128xi32>
    %cst_17 = arith.constant -1.000000e+10 : f32
    %25 = vector.broadcast %cst_17 : f32 to vector<8x128xf32>
    %26 = arith.select %24, %21, %25 : vector<8x128xi1>, vector<8x128xf32>
    %27 = tpu.iota {dimensions = array<i32: 1>} : vector<8x128xi32>
    %c8_i32 = arith.constant 8 : i32
    %28 = vector.broadcast %c8_i32 : i32 to vector<8x128xi32>
    %29 = arith.cmpi slt, %27, %28 : vector<8x128xi32>
    %cst_18 = arith.constant -3.000000e+38 : f32
    %30 = vector.broadcast %cst_18 : f32 to vector<8x128xf32>
    %31 = arith.select %29, %26, %30 : vector<8x128xi1>, vector<8x128xf32>
    %cst_19 = arith.constant dense<0xFF800000> : vector<8xf32>
    %32 = vector.multi_reduction <maximumf>, %31, %cst_19 [1] : vector<8x128xf32> to vector<8xf32>
    %33 = vector.shape_cast %32 : vector<8xf32> to vector<8x1xf32>
    %34 = vector.broadcast %33 : vector<8x1xf32> to vector<8x128xf32>
    %35 = arith.subf %31, %34 : vector<8x128xf32>
    %36 = math.exp %35 : vector<8x128xf32>
    %cst_20 = arith.constant dense<0.000000e+00> : vector<8xf32>
    %37 = vector.multi_reduction <add>, %36, %cst_20 [1] : vector<8x128xf32> to vector<8xf32>
    %38 = vector.shape_cast %37 : vector<8xf32> to vector<8x1xf32>
    %39 = vector.broadcast %38 : vector<8x1xf32> to vector<8x128xf32>
    %40 = arith.divf %36, %39 : vector<8x128xf32>
    %c0_21 = arith.constant 0 : index
    %c0_22 = arith.constant 0 : index
    %41 = vector.load %arg8[%c0_21, %c0_22] : memref<8x128xf32, #tpu.memory_space<vmem>>, vector<8x128xf32>
    tpu.vector_store %arg8[%c0_21, %c0_22], %40 {strides = array<i32>} : memref<8x128xf32, #tpu.memory_space<vmem>>, vector<8x128xf32>,
    return
  }
  func.func @transform_0(%arg0: i32) -> (i32, i32) {
    %c0_i32 = arith.constant 0 : i32
    %c0_i32_0 = arith.constant 0 : i32
    return %arg0, %c0_i32 : i32, i32
  }
  func.func @transform_1(%arg0: i32) -> (i32, i32, i32) {
    %c0_i32 = arith.constant 0 : i32
    %c0_i32_0 = arith.constant 0 : i32
    %c0_i32_1 = arith.constant 0 : i32
    return %c0_i32, %arg0, %c0_i32_0 : i32, i32, i32
  }
  func.func @transform_2(%arg0: i32) -> (i32, i32) {
    %c0_i32 = arith.constant 0 : i32
    %c0_i32_0 = arith.constant 0 : i32
    %c0_i32_1 = arith.constant 0 : i32
    return %c0_i32, %c0_i32_0 : i32, i32
  }
  func.func @transform_3(%arg0: i32) -> (i32, i32) {
    %c0_i32 = arith.constant 0 : i32
    %c0_i32_0 = arith.constant 0 : i32
    %c0_i32_1 = arith.constant 0 : i32
    return %c0_i32, %c0_i32_0 : i32, i32
  }
  func.func @transform_4(%arg0: i32) -> (i32, i32) {
    %c0_i32 = arith.constant 0 : i32
    %c0_i32_0 = arith.constant 0 : i32
    %c0_i32_1 = arith.constant 0 : i32
    return %c0_i32, %c0_i32_0 : i32, i32
  }
  func.func @transform_5(%arg0: i32) -> (i32, i32) {
    %c0_i32 = arith.constant 0 : i32
    %c0_i32_0 = arith.constant 0 : i32
    %c0_i32_1 = arith.constant 0 : i32
    return %c0_i32, %c0_i32_0 : i32, i32
  }
  func.func @transform_6(%arg0: i32) -> (i32, i32) {
    %c0_i32 = arith.constant 0 : i32
    %c0_i32_0 = arith.constant 0 : i32
    return %arg0, %c0_i32 : i32, i32
  }
  func.func @transform_7(%arg0: i32) -> (i32, i32) {
    %c0_i32 = arith.constant 0 : i32
    %c0_i32_0 = arith.constant 0 : i32
    return %arg0, %c0_i32 : i32, i32
  }
}

</mosaic_0001>

<llo_original>
// kernel: tpu_custom_call.1
$region0: #{tpu_custom_call.1}
  #allocation0 [shape = 'u32[]', space=smem, size = 0x4, offset = 0x4, fixed_abs, tag = 'smem constant byte address 0x4 - core index']
  #allocation1 [shape = 'u32[144,128]{1,0:T(1,128)}', space=vmem, size = 0x12000, scoped, tag = 'internal scratch']
  #allocation11 [shape = 's32[]', space=sflag, size = 0x4, offset = 0, fixed_abs, tag = 'sflag constant byte address 0x0 - dummy sync flag']
  %s0 = inlined_call_operand.hbm [shape: f32[8,32], index: 0, kind: input, shape index: {}]
  %s1 = inlined_call_operand.hbm [shape: f32[8,2,32], index: 1, kind: input, shape index: {}]
  %s2 = inlined_call_operand.vmem [shape: f32[32,32], index: 2, kind: input, shape index: {}]
  %s3 = inlined_call_operand.hbm [shape: f32[32,32], index: 3, kind: input, shape index: {}]
  %s4 = inlined_call_operand.hbm [shape: f32[1,32], index: 4, kind: input, shape index: {}]
  %s5 = inlined_call_operand.vmem [shape: f32[32,1], index: 5, kind: input, shape index: {}]
  %s6 = inlined_call_operand.vmem [shape: s32[8,128], index: 6, kind: input, shape index: {}]
  %s7 = inlined_call_operand.hbm [shape: f32[8,128], index: 7, kind: output, shape index: {}]
  %s8 = sld [smem:[#allocation0]]
  $region54: #{tpu_custom_call.1} parent=0
    _
  %s10 = ssub.s32 1, %s8
  %s11 = scalar_select 0, %s10, %s8
  $region1: #{tpu_custom_call.1} parent=0
    #allocation2 [shape = 'u8[4096]{0}', space=vmem, size = 0x1000, scoped, tag = 'input window, operand 0, single buffered']
    #allocation3 [shape = 's32[1]{0}', space=sflag, size = 0x4, scoped, tag = 'scoped memory for tpu_custom_call.1']
    #allocation4 [shape = 's32[1]{0}', space=sflag, size = 0x4, scoped, tag = 'scoped memory for tpu_custom_call.1']
    #allocation5 [shape = 'u8[32768]{0}', space=vmem, size = 0x8000, scoped, tag = 'input window, operand 1, single buffered']
    #allocation6 [shape = 's32[1]{0}', space=sflag, size = 0x4, scoped, tag = 'scoped memory for tpu_custom_call.1']
    #allocation7 [shape = 'u8[16384]{0}', space=vmem, size = 0x4000, scoped, tag = 'input window, operand 3, single buffered']
    #allocation8 [shape = 'u8[512]{0}', space=vmem, size = 0x400, scoped, tag = 'input window, operand 4, single buffered']
    #allocation9 [shape = 's32[1]{0}', space=sflag, size = 0x4, scoped, tag = 'scoped memory for tpu_custom_call.1']
    #allocation10 [shape = 'u8[4096]{0}', space=vmem, size = 0x1000, scoped, tag = 'output window, operand 0, single buffered']
    %12 = vsyncpa [#allocation3], 0
    %13 = vsyncpa [#allocation6], 0
    %14 = vsyncpa [#allocation9], 0
    %15 = vsyncpa [#allocation4], 0
    // Predicated region
    $region2: #{tpu_custom_call.1} parent=1 // pred_check
      _
    $region3: #{tpu_custom_call.1} parent=1 // pred_check_branch
      %17 = sbr.rel (0) target = $region5
    $region4: #{tpu_custom_call.1} parent=1 // pred_region
      %s19 = ssub.s32 128, 128
      %20 = vsyncadd [#allocation3], %s19
      %s22 = sshll.u32 [#allocation2], 4
      %s23 = int_to_ptr.vmem [resolvable:$true] %s22
      %25 = dma.hbm_to_vmem [thread:$0]  %s0, 128, %s23, [#allocation3]
    $region5: #{tpu_custom_call.1} parent=1 // pred_fallthru
      _
    // Predicated region
    $region6: #{tpu_custom_call.1} parent=1 // pred_check
      _
    $region7: #{tpu_custom_call.1} parent=1 // pred_check_branch
      %27 = sbr.rel (0) target = $region9
    $region8: #{tpu_custom_call.1} parent=1 // pred_region
      #allocation12 [shape = 'u32[6]{0}', space=smem, size = 0x18, scoped, tag = 'DMA stride descriptor']
      %s29 = ssub.s32 1024, 256
      %30 = vsyncadd [#allocation6], %s29
      %s32 = sshll.u32 1, 14
      %s33 = sxor.u32 4294967295, %s32
      %s35 = sld [smem:[#allocation0]]
      %s36 = sadd.s32 2, %s35
      %s38 = sshll.u32 7, 26
      %s39 = sxor.u32 4294967295, %s38
      %s40 = sand.u32 0, %s39
      %s41 = sshll.u32 %s36, 26
      %s42 = sor.u32 %s40, %s41
      %s43 = sshll.u32 [#allocation5], 4
      %s44 = int_to_ptr.vmem [resolvable:$true] %s43
      %50 = sst [smem:[#allocation12]] 32
      %s51 = scalar_lea.smem [#allocation12], 1
      %52 = sst [smem:[%s51]] 128
      %s53 = scalar_lea.smem [#allocation12], 2
      %54 = sst [smem:[%s53]] 1
      %s55 = scalar_lea.smem [#allocation12], 3
      %56 = sst [smem:[%s55]] 32
      %s57 = scalar_lea.smem [#allocation12], 4
      %58 = sst [smem:[%s57]] 32
      %s59 = scalar_lea.smem [#allocation12], 5
      %60 = sst [smem:[%s59]] 2
      %62 = dma.general %s1, 256, %s44, [#allocation6], 131072, [#allocation12], %s42, 0
    $region9: #{tpu_custom_call.1} parent=1 // pred_fallthru
      _
    // Predicated region
    $region10: #{tpu_custom_call.1} parent=1 // pred_check
      _
    $region11: #{tpu_custom_call.1} parent=1 // pred_check_branch
      %64 = sbr.rel (0) target = $region13
    $region12: #{tpu_custom_call.1} parent=1 // pred_region
      _
    $region13: #{tpu_custom_call.1} parent=1 // pred_fallthru
      _
    // Predicated region
    $region14: #{tpu_custom_call.1} parent=1 // pred_check
      _
    $region15: #{tpu_custom_call.1} parent=1 // pred_check_branch
      %66 = sbr.rel (0) target = $region17
    $region16: #{tpu_custom_call.1} parent=1 // pred_region
      %s68 = ssub.s32 512, 512
      %69 = vsyncadd [#allocation6], %s68
      %s70 = sshll.u32 [#allocation7], 4
      %s71 = int_to_ptr.vmem [resolvable:$true] %s70
      %76 = dma.hbm_to_vmem [thread:$0]  %s3, 512, %s71, [#allocation6], 128, 128, 8
    $region17: #{tpu_custom_call.1} parent=1 // pred_fallthru
      _
    // Predicated region
    $region18: #{tpu_custom_call.1} parent=1 // pred_check
      _
    $region19: #{tpu_custom_call.1} parent=1 // pred_check_branch
      %78 = sbr.rel (0) target = $region21
    $region20: #{tpu_custom_call.1} parent=1 // pred_region
      %s80 = ssub.s32 16, 16
      %81 = vsyncadd [#allocation9], %s80
      %s83 = sshll.u32 [#allocation8], 4
      %s84 = int_to_ptr.vmem [resolvable:$true] %s83
      %86 = dma.hbm_to_vmem [thread:$0]  %s4, 16, %s84, [#allocation9]
    $region21: #{tpu_custom_call.1} parent=1 // pred_fallthru
      _
    // Predicated region
    $region22: #{tpu_custom_call.1} parent=1 // pred_check
      _
    $region23: #{tpu_custom_call.1} parent=1 // pred_check_branch
      %88 = sbr.rel (0) target = $region25
    $region24: #{tpu_custom_call.1} parent=1 // pred_region
      _
    $region25: #{tpu_custom_call.1} parent=1 // pred_fallthru
      _
    // Predicated region
    $region26: #{tpu_custom_call.1} parent=1 // pred_check
      _
    $region27: #{tpu_custom_call.1} parent=1 // pred_check_branch
      %90 = sbr.rel (0) target = $region29
    $region28: #{tpu_custom_call.1} parent=1 // pred_region
      _
    $region29: #{tpu_custom_call.1} parent=1 // pred_fallthru
      _
    // Predicated region
    $region30: #{tpu_custom_call.1} parent=1 // pred_check
      _
    $region31: #{tpu_custom_call.1} parent=1 // pred_check_branch
      %92 = sbr.rel (0) target = $region33
    $region32: #{tpu_custom_call.1} parent=1 // pred_region
      %93 = dma.done [#allocation3], 128
    $region33: #{tpu_custom_call.1} parent=1 // pred_fallthru
      _
    // Predicated region
    $region34: #{tpu_custom_call.1} parent=1 // pred_check
      _
    $region35: #{tpu_custom_call.1} parent=1 // pred_check_branch
      %95 = sbr.rel (0) target = $region37
    $region36: #{tpu_custom_call.1} parent=1 // pred_region
      %96 = dma.done [#allocation6], 1024
    $region37: #{tpu_custom_call.1} parent=1 // pred_fallthru
      _
    // Predicated region
    $region38: #{tpu_custom_call.1} parent=1 // pred_check
      _
    $region39: #{tpu_custom_call.1} parent=1 // pred_check_branch
      %98 = sbr.rel (0) target = $region41
    $region40: #{tpu_custom_call.1} parent=1 // pred_region
      %99 = dma.done [#allocation6], 512
    $region41: #{tpu_custom_call.1} parent=1 // pred_fallthru
      _
    // Predicated region
    $region42: #{tpu_custom_call.1} parent=1 // pred_check
      _
    $region43: #{tpu_custom_call.1} parent=1 // pred_check_branch
      %101 = sbr.rel (0) target = $region45
    $region44: #{tpu_custom_call.1} parent=1 // pred_region
      %102 = dma.done [#allocation9], 16
    $region45: #{tpu_custom_call.1} parent=1 // pred_fallthru
      _
    %v103 = vld [vmem:[#allocation2] sm:$0xff]
    %v104 = vld [vmem:[%s2] sm:$0xff]
    %v105 = vld [vmem:[%s2 + $0x8] sm:$0xff]
    %v106 = vld [vmem:[%s2 + $0x10] sm:$0xff]
    %v107 = vld [vmem:[%s2 + $0x18] sm:$0xff]
    %v108 = vld [vmem:[#allocation8] sm:$0x1]
    %v110 = vlaneseq
    %v111 = vshrl.u32 %v110, 7
    %v112 = vsub.s32 0, %v111
    %v113 = vrot.slane %v108, %v112
    %vm115 = vcmask 261120
    %v117 = vsel %vm115, %v103, 0
    %119 = vmatprep.subr.mxu0 0.0
    %120 = vmatpush1.msra.mxu0 0.0
    %121 = vmatprep.subr.mxu0 0.0
    %122 = vmatpush1.msra.mxu0 0.0
    %123 = vmatprep.subr.mxu0 0.0
    %124 = vmatpush1.msra.mxu0 0.0
    %125 = vmatprep.subr.mxu0 0.0
    %126 = vmatpush1.msra.mxu0 0.0
    %127 = vmatprep.subr.mxu0 0.0
    %128 = vmatpush1.msra.mxu0 0.0
    %129 = vmatprep.subr.mxu0 0.0
    %130 = vmatpush1.msra.mxu0 0.0
    %131 = vmatprep.subr.mxu0 0.0
    %132 = vmatpush1.msra.mxu0 0.0
    %133 = vmatprep.subr.mxu0 0.0
    %134 = vmatpush1.msra.mxu0 0.0
    %135 = vmatprep.subr.mxu0 0.0
    %136 = vmatpush1.msra.mxu0 0.0
    %137 = vmatprep.subr.mxu0 0.0
    %138 = vmatpush1.msra.mxu0 0.0
    %139 = vmatprep.subr.mxu0 0.0
    %140 = vmatpush1.msra.mxu0 0.0
    %141 = vmatprep.subr.mxu0 0.0
    %142 = vmatpush1.msra.mxu0 0.0
    %143 = vmatprep.subr.mxu0 0.0
    %v144 = vand.u32 %v107, 4294901760
    %145 = vmatpush1.msra.mxu0 %v144
    %146 = vmatprep.subr.mxu0 0.0
    %v147 = vand.u32 %v106, 4294901760
    %148 = vmatpush1.msra.mxu0 %v147
    %149 = vmatprep.subr.mxu0 0.0
    %v150 = vand.u32 %v105, 4294901760
    %151 = vmatpush1.msra.mxu0 %v150
    %152 = vmatprep.subr.mxu0 0.0
    %v153 = vand.u32 %v104, 4294901760
    %154 = vmatpush1.msra.mxu0 %v153
    %155 = vmatprep.subr.mxu0 0.0
    %156 = vmatpush2.msra.mxu0 0.0
    %157 = vmatprep.subr.mxu0 0.0
    %158 = vmatpush2.msra.mxu0 0.0
    %159 = vmatprep.subr.mxu0 0.0
    %160 = vmatpush2.msra.mxu0 0.0
    %161 = vmatprep.subr.mxu0 0.0
    %162 = vmatpush2.msra.mxu0 0.0
    %163 = vmatprep.subr.mxu0 0.0
    %164 = vmatpush2.msra.mxu0 0.0
    %165 = vmatprep.subr.mxu0 0.0
    %166 = vmatpush2.msra.mxu0 0.0
    %167 = vmatprep.subr.mxu0 0.0
    %168 = vmatpush2.msra.mxu0 0.0
    %169 = vmatprep.subr.mxu0 0.0
    %170 = vmatpush2.msra.mxu0 0.0
    %171 = vmatprep.subr.mxu0 0.0
    %172 = vmatpush2.msra.mxu0 0.0
    %173 = vmatprep.subr.mxu0 0.0
    %174 = vmatpush2.msra.mxu0 0.0
    %175 = vmatprep.subr.mxu0 0.0
    %176 = vmatpush2.msra.mxu0 0.0
    %177 = vmatprep.subr.mxu0 0.0
    %178 = vmatpush2.msra.mxu0 0.0
    %179 = vmatprep.subr.mxu0 0.0
    %180 = vmatpush2.msra.mxu0 0.0
    %181 = vmatprep.subr.mxu0 0.0
    %182 = vmatpush2.msra.mxu0 0.0
    %183 = vmatprep.subr.mxu0 0.0
    %184 = vmatpush2.msra.mxu0 0.0
    %185 = vmatprep.subr.mxu0 0.0
    %186 = vmatpush2.msra.mxu0 0.0
    %187 = vmatprep.mubr.f32.mxu0 0.0
    %v188 = vand.u32 %v117, 4294901760
    %v189 = vsub.f32 %v117, %v188
    %v190 = vand.u32 %v189, 4294901760
    %v191 = vsub.f32 %v189, %v190
    %v192 = vand.u32 %v191, 4294901760
    %193 = vmatmul.mubr.f32.gmra.mxu0 %v192
    %v194 = vpop.f32.mrf.mxu0
    %v195 = vadd.f32 %v113, %v194
    %v196 = vpop.f32.mrf.mxu0
    %197 = vdwg.mxu0
    %198 = vmatprep.subr.mxu0 0.0
    %199 = vmatpush1.msra.mxu0 0.0
    %200 = vmatprep.subr.mxu0 0.0
    %201 = vmatpush1.msra.mxu0 0.0
    %202 = vmatprep.subr.mxu0 0.0
    %203 = vmatpush1.msra.mxu0 0.0
    %204 = vmatprep.subr.mxu0 0.0
    %205 = vmatpush1.msra.mxu0 0.0
    %206 = vmatprep.subr.mxu0 0.0
    %207 = vmatpush1.msra.mxu0 0.0
    %208 = vmatprep.subr.mxu0 0.0
    %209 = vmatpush1.msra.mxu0 0.0
    %210 = vmatprep.subr.mxu0 0.0
    %211 = vmatpush1.msra.mxu0 0.0
    %212 = vmatprep.subr.mxu0 0.0
    %213 = vmatpush1.msra.mxu0 0.0
    %214 = vmatprep.subr.mxu0 0.0
    %215 = vmatpush1.msra.mxu0 0.0
    %216 = vmatprep.subr.mxu0 0.0
    %217 = vmatpush1.msra.mxu0 0.0
    %218 = vmatprep.subr.mxu0 0.0
    %219 = vmatpush1.msra.mxu0 0.0
    %220 = vmatprep.subr.mxu0 0.0
    %221 = vmatpush1.msra.mxu0 0.0
    %222 = vmatprep.subr.mxu0 0.0
    %v223 = vand.u32 %v107, 4294901760
    %v224 = vsub.f32 %v107, %v223
    %v225 = vand.u32 %v224, 4294901760
    %v226 = vsub.f32 %v224, %v225
    %v227 = vand.u32 %v226, 4294901760
    %228 = vmatpush1.msra.mxu0 %v227
    %229 = vmatprep.subr.mxu0 0.0
    %v230 = vand.u32 %v106, 4294901760
    %v231 = vsub.f32 %v106, %v230
    %v232 = vand.u32 %v231, 4294901760
    %v233 = vsub.f32 %v231, %v232
    %v234 = vand.u32 %v233, 4294901760
    %235 = vmatpush1.msra.mxu0 %v234
    %236 = vmatprep.subr.mxu0 0.0
    %v237 = vand.u32 %v105, 4294901760
    %v238 = vsub.f32 %v105, %v237
    %v239 = vand.u32 %v238, 4294901760
    %v240 = vsub.f32 %v238, %v239
    %v241 = vand.u32 %v240, 4294901760
    %242 = vmatpush1.msra.mxu0 %v241
    %243 = vmatprep.subr.mxu0 0.0
    %v244 = vand.u32 %v104, 4294901760
    %v245 = vsub.f32 %v104, %v244
    %v246 = vand.u32 %v245, 4294901760
    %v247 = vsub.f32 %v245, %v246
    %v248 = vand.u32 %v247, 4294901760
    %249 = vmatpush1.msra.mxu0 %v248
    %250 = vmatprep.subr.mxu0 0.0
    %251 = vmatpush2.msra.mxu0 0.0
    %252 = vmatprep.subr.mxu0 0.0
    %253 = vmatpush2.msra.mxu0 0.0
    %254 = vmatprep.subr.mxu0 0.0
    %255 = vmatpush2.msra.mxu0 0.0
    %256 = vmatprep.subr.mxu0 0.0
    %257 = vmatpush2.msra.mxu0 0.0
    %258 = vmatprep.subr.mxu0 0.0
    %259 = vmatpush2.msra.mxu0 0.0
    %260 = vmatprep.subr.mxu0 0.0
    %261 = vmatpush2.msra.mxu0 0.0
    %262 = vmatprep.subr.mxu0 0.0
    %263 = vmatpush2.msra.mxu0 0.0
    %264 = vmatprep.subr.mxu0 0.0
    %265 = vmatpush2.msra.mxu0 0.0
    %266 = vmatprep.subr.mxu0 0.0
    %267 = vmatpush2.msra.mxu0 0.0
    %268 = vmatprep.subr.mxu0 0.0
    %269 = vmatpush2.msra.mxu0 0.0
    %270 = vmatprep.subr.mxu0 0.0
    %271 = vmatpush2.msra.mxu0 0.0
    %272 = vmatprep.subr.mxu0 0.0
    %273 = vmatpush2.msra.mxu0 0.0
    %274 = vmatprep.subr.mxu0 0.0
    %275 = vmatpush2.msra.mxu0 0.0
    %276 = vmatprep.subr.mxu0 0.0
    %277 = vmatpush2.msra.mxu0 0.0
    %278 = vmatprep.subr.mxu0 0.0
    %279 = vmatpush2.msra.mxu0 0.0
    %280 = vmatprep.subr.mxu0 0.0
    %281 = vmatpush2.msra.mxu0 0.0
    %282 = vmatprep.mubr.f32.mxu0 0.0
    %v283 = vand.u32 %v117, 4294901760
    %284 = vmatmul.mubr.f32.gmra.mxu0 %v283
    %v285 = vpop.f32.mrf.mxu0
    %v286 = vadd.f32 %v195, %v285
    %v287 = vpop.f32.mrf.mxu0
    %288 = vdwg.mxu0
    %289 = vmatprep.subr.mxu0 0.0
    %290 = vmatpush1.msra.mxu0 0.0
    %291 = vmatprep.subr.mxu0 0.0
    %292 = vmatpush1.msra.mxu0 0.0
    %293 = vmatprep.subr.mxu0 0.0
    %294 = vmatpush1.msra.mxu0 0.0
    %295 = vmatprep.subr.mxu0 0.0
    %296 = vmatpush1.msra.mxu0 0.0
    %297 = vmatprep.subr.mxu0 0.0
    %298 = vmatpush1.msra.mxu0 0.0
    %299 = vmatprep.subr.mxu0 0.0
    %300 = vmatpush1.msra.mxu0 0.0
    %301 = vmatprep.subr.mxu0 0.0
    %302 = vmatpush1.msra.mxu0 0.0
    %303 = vmatprep.subr.mxu0 0.0
    %304 = vmatpush1.msra.mxu0 0.0
    %305 = vmatprep.subr.mxu0 0.0
    %306 = vmatpush1.msra.mxu0 0.0
    %307 = vmatprep.subr.mxu0 0.0
    %308 = vmatpush1.msra.mxu0 0.0
    %309 = vmatprep.subr.mxu0 0.0
    %310 = vmatpush1.msra.mxu0 0.0
    %311 = vmatprep.subr.mxu0 0.0
    %312 = vmatpush1.msra.mxu0 0.0
    %313 = vmatprep.subr.mxu0 0.0
    %v314 = vand.u32 %v107, 4294901760
    %v315 = vsub.f32 %v107, %v314
    %316 = vmatpush1.msra.mxu0 %v315
    %317 = vmatprep.subr.mxu0 0.0
    %v318 = vand.u32 %v106, 4294901760
    %v319 = vsub.f32 %v106, %v318
    %320 = vmatpush1.msra.mxu0 %v319
    %321 = vmatprep.subr.mxu0 0.0
    %v322 = vand.u32 %v105, 4294901760
    %v323 = vsub.f32 %v105, %v322
    %324 = vmatpush1.msra.mxu0 %v323
    %325 = vmatprep.subr.mxu0 0.0
    %v326 = vand.u32 %v104, 4294901760
    %v327 = vsub.f32 %v104, %v326
    %328 = vmatpush1.msra.mxu0 %v327
    %329 = vmatprep.subr.mxu0 0.0
    %330 = vmatpush2.msra.mxu0 0.0
    %331 = vmatprep.subr.mxu0 0.0
    %332 = vmatpush2.msra.mxu0 0.0
    %333 = vmatprep.subr.mxu0 0.0
    %334 = vmatpush2.msra.mxu0 0.0
    %335 = vmatprep.subr.mxu0 0.0
    %336 = vmatpush2.msra.mxu0 0.0
    %337 = vmatprep.subr.mxu0 0.0
    %338 = vmatpush2.msra.mxu0 0.0
    %339 = vmatprep.subr.mxu0 0.0
    %340 = vmatpush2.msra.mxu0 0.0
    %341 = vmatprep.subr.mxu0 0.0
    %342 = vmatpush2.msra.mxu0 0.0
    %343 = vmatprep.subr.mxu0 0.0
    %344 = vmatpush2.msra.mxu0 0.0
    %345 = vmatprep.subr.mxu0 0.0
    %346 = vmatpush2.msra.mxu0 0.0
    %347 = vmatprep.subr.mxu0 0.0
    %348 = vmatpush2.msra.mxu0 0.0
    %349 = vmatprep.subr.mxu0 0.0
    %350 = vmatpush2.msra.mxu0 0.0
    %351 = vmatprep.subr.mxu0 0.0
    %352 = vmatpush2.msra.mxu0 0.0
    %353 = vmatprep.subr.mxu0 0.0
    %354 = vmatpush2.msra.mxu0 0.0
    %355 = vmatprep.subr.mxu0 0.0
    %356 = vmatpush2.msra.mxu0 0.0
    %357 = vmatprep.subr.mxu0 0.0
    %358 = vmatpush2.msra.mxu0 0.0
    %359 = vmatprep.subr.mxu0 0.0
    %360 = vmatpush2.msra.mxu0 0.0
    %361 = vmatprep.mubr.f32.mxu0 0.0
    %v362 = vand.u32 %v117, 4294901760
    %v363 = vsub.f32 %v117, %v362
    %364 = vmatmul.mubr.f32.gmra.mxu0 %v363
    %v365 = vpop.f32.mrf.mxu0
    %v366 = vadd.f32 %v286, %v365
    %v367 = vpop.f32.mrf.mxu0
    %368 = vdwg.mxu0
    %369 = vmatprep.subr.mxu0 0.0
    %370 = vmatpush1.msra.mxu0 0.0
    %371 = vmatprep.subr.mxu0 0.0
    %372 = vmatpush1.msra.mxu0 0.0
    %373 = vmatprep.subr.mxu0 0.0
    %374 = vmatpush1.msra.mxu0 0.0
    %375 = vmatprep.subr.mxu0 0.0
    %376 = vmatpush1.msra.mxu0 0.0
    %377 = vmatprep.subr.mxu0 0.0
    %378 = vmatpush1.msra.mxu0 0.0
    %379 = vmatprep.subr.mxu0 0.0
    %380 = vmatpush1.msra.mxu0 0.0
    %381 = vmatprep.subr.mxu0 0.0
    %382 = vmatpush1.msra.mxu0 0.0
    %383 = vmatprep.subr.mxu0 0.0
    %384 = vmatpush1.msra.mxu0 0.0
    %385 = vmatprep.subr.mxu0 0.0
    %386 = vmatpush1.msra.mxu0 0.0
    %387 = vmatprep.subr.mxu0 0.0
    %388 = vmatpush1.msra.mxu0 0.0
    %389 = vmatprep.subr.mxu0 0.0
    %390 = vmatpush1.msra.mxu0 0.0
    %391 = vmatprep.subr.mxu0 0.0
    %392 = vmatpush1.msra.mxu0 0.0
    %393 = vmatprep.subr.mxu0 0.0
    %v394 = vand.u32 %v107, 4294901760
    %395 = vmatpush1.msra.mxu0 %v394
    %396 = vmatprep.subr.mxu0 0.0
    %v397 = vand.u32 %v106, 4294901760
    %398 = vmatpush1.msra.mxu0 %v397
    %399 = vmatprep.subr.mxu0 0.0
    %v400 = vand.u32 %v105, 4294901760
    %401 = vmatpush1.msra.mxu0 %v400
    %402 = vmatprep.subr.mxu0 0.0
    %v403 = vand.u32 %v104, 4294901760
    %404 = vmatpush1.msra.mxu0 %v403
    %405 = vmatprep.subr.mxu0 0.0
    %406 = vmatpush2.msra.mxu0 0.0
    %407 = vmatprep.subr.mxu0 0.0
    %408 = vmatpush2.msra.mxu0 0.0
    %409 = vmatprep.subr.mxu0 0.0
    %410 = vmatpush2.msra.mxu0 0.0
    %411 = vmatprep.subr.mxu0 0.0
    %412 = vmatpush2.msra.mxu0 0.0
    %413 = vmatprep.subr.mxu0 0.0
    %414 = vmatpush2.msra.mxu0 0.0
    %415 = vmatprep.subr.mxu0 0.0
    %416 = vmatpush2.msra.mxu0 0.0
    %417 = vmatprep.subr.mxu0 0.0
    %418 = vmatpush2.msra.mxu0 0.0
    %419 = vmatprep.subr.mxu0 0.0
    %420 = vmatpush2.msra.mxu0 0.0
    %421 = vmatprep.subr.mxu0 0.0
    %422 = vmatpush2.msra.mxu0 0.0
    %423 = vmatprep.subr.mxu0 0.0
    %424 = vmatpush2.msra.mxu0 0.0
    %425 = vmatprep.subr.mxu0 0.0
    %426 = vmatpush2.msra.mxu0 0.0
    %427 = vmatprep.subr.mxu0 0.0
    %428 = vmatpush2.msra.mxu0 0.0
    %429 = vmatprep.subr.mxu0 0.0
    %430 = vmatpush2.msra.mxu0 0.0
    %431 = vmatprep.subr.mxu0 0.0
    %432 = vmatpush2.msra.mxu0 0.0
    %433 = vmatprep.subr.mxu0 0.0
    %434 = vmatpush2.msra.mxu0 0.0
    %435 = vmatprep.subr.mxu0 0.0
    %436 = vmatpush2.msra.mxu0 0.0
    %437 = vmatprep.mubr.f32.mxu0 0.0
    %v438 = vand.u32 %v117, 4294901760
    %v439 = vsub.f32 %v117, %v438
    %v440 = vand.u32 %v439, 4294901760
    %441 = vmatmul.mubr.f32.gmra.mxu0 %v440
    %v442 = vpop.f32.mrf.mxu0
    %v443 = vadd.f32 %v366, %v442
    %v444 = vpop.f32.mrf.mxu0
    %445 = vdwg.mxu0
    %446 = vmatprep.subr.mxu0 0.0
    %447 = vmatpush1.msra.mxu0 0.0
    %448 = vmatprep.subr.mxu0 0.0
    %449 = vmatpush1.msra.mxu0 0.0
    %450 = vmatprep.subr.mxu0 0.0
    %451 = vmatpush1.msra.mxu0 0.0
    %452 = vmatprep.subr.mxu0 0.0
    %453 = vmatpush1.msra.mxu0 0.0
    %454 = vmatprep.subr.mxu0 0.0
    %455 = vmatpush1.msra.mxu0 0.0
    %456 = vmatprep.subr.mxu0 0.0
    %457 = vmatpush1.msra.mxu0 0.0
    %458 = vmatprep.subr.mxu0 0.0
    %459 = vmatpush1.msra.mxu0 0.0
    %460 = vmatprep.subr.mxu0 0.0
    %461 = vmatpush1.msra.mxu0 0.0
    %462 = vmatprep.subr.mxu0 0.0
    %463 = vmatpush1.msra.mxu0 0.0
    %464 = vmatprep.subr.mxu0 0.0
    %465 = vmatpush1.msra.mxu0 0.0
    %466 = vmatprep.subr.mxu0 0.0
    %467 = vmatpush1.msra.mxu0 0.0
    %468 = vmatprep.subr.mxu0 0.0
    %469 = vmatpush1.msra.mxu0 0.0
    %470 = vmatprep.subr.mxu0 0.0
    %v471 = vand.u32 %v107, 4294901760
    %v472 = vsub.f32 %v107, %v471
    %v473 = vand.u32 %v472, 4294901760
    %474 = vmatpush1.msra.mxu0 %v473
    %475 = vmatprep.subr.mxu0 0.0
    %v476 = vand.u32 %v106, 4294901760
    %v477 = vsub.f32 %v106, %v476
    %v478 = vand.u32 %v477, 4294901760
    %479 = vmatpush1.msra.mxu0 %v478
    %480 = vmatprep.subr.mxu0 0.0
    %v481 = vand.u32 %v105, 4294901760
    %v482 = vsub.f32 %v105, %v481
    %v483 = vand.u32 %v482, 4294901760
    %484 = vmatpush1.msra.mxu0 %v483
    %485 = vmatprep.subr.mxu0 0.0
    %v486 = vand.u32 %v104, 4294901760
    %v487 = vsub.f32 %v104, %v486
    %v488 = vand.u32 %v487, 4294901760
    %489 = vmatpush1.msra.mxu0 %v488
    %490 = vmatprep.subr.mxu0 0.0
    %491 = vmatpush2.msra.mxu0 0.0
    %492 = vmatprep.subr.mxu0 0.0
    %493 = vmatpush2.msra.mxu0 0.0
    %494 = vmatprep.subr.mxu0 0.0
    %495 = vmatpush2.msra.mxu0 0.0
    %496 = vmatprep.subr.mxu0 0.0
    %497 = vmatpush2.msra.mxu0 0.0
    %498 = vmatprep.subr.mxu0 0.0
    %499 = vmatpush2.msra.mxu0 0.0
    %500 = vmatprep.subr.mxu0 0.0
    %501 = vmatpush2.msra.mxu0 0.0
    %502 = vmatprep.subr.mxu0 0.0
    %503 = vmatpush2.msra.mxu0 0.0
    %504 = vmatprep.subr.mxu0 0.0
    %505 = vmatpush2.msra.mxu0 0.0
    %506 = vmatprep.subr.mxu0 0.0
    %507 = vmatpush2.msra.mxu0 0.0
    %508 = vmatprep.subr.mxu0 0.0
    %509 = vmatpush2.msra.mxu0 0.0
    %510 = vmatprep.subr.mxu0 0.0
    %511 = vmatpush2.msra.mxu0 0.0
    %512 = vmatprep.subr.mxu0 0.0
    %513 = vmatpush2.msra.mxu0 0.0
    %514 = vmatprep.subr.mxu0 0.0
    %515 = vmatpush2.msra.mxu0 0.0
    %516 = vmatprep.subr.mxu0 0.0
    %517 = vmatpush2.msra.mxu0 0.0
    %518 = vmatprep.subr.mxu0 0.0
    %519 = vmatpush2.msra.mxu0 0.0
    %520 = vmatprep.subr.mxu0 0.0
    %521 = vmatpush2.msra.mxu0 0.0
    %522 = vmatprep.mubr.f32.mxu0 0.0
    %v523 = vand.u32 %v117, 4294901760
    %524 = vmatmul.mubr.f32.gmra.mxu0 %v523
    %v525 = vpop.f32.mrf.mxu0
    %v526 = vadd.f32 %v443, %v525
    %v527 = vpop.f32.mrf.mxu0
    %528 = vdwg.mxu0
    %529 = vmatprep.subr.mxu0 0.0
    %530 = vmatpush1.msra.mxu0 0.0
    %531 = vmatprep.subr.mxu0 0.0
    %532 = vmatpush1.msra.mxu0 0.0
    %533 = vmatprep.subr.mxu0 0.0
    %534 = vmatpush1.msra.mxu0 0.0
    %535 = vmatprep.subr.mxu0 0.0
    %536 = vmatpush1.msra.mxu0 0.0
    %537 = vmatprep.subr.mxu0 0.0
    %538 = vmatpush1.msra.mxu0 0.0
    %539 = vmatprep.subr.mxu0 0.0
    %540 = vmatpush1.msra.mxu0 0.0
    %541 = vmatprep.subr.mxu0 0.0
    %542 = vmatpush1.msra.mxu0 0.0
    %543 = vmatprep.subr.mxu0 0.0
    %544 = vmatpush1.msra.mxu0 0.0
    %545 = vmatprep.subr.mxu0 0.0
    %546 = vmatpush1.msra.mxu0 0.0
    %547 = vmatprep.subr.mxu0 0.0
    %548 = vmatpush1.msra.mxu0 0.0
    %549 = vmatprep.subr.mxu0 0.0
    %550 = vmatpush1.msra.mxu0 0.0
    %551 = vmatprep.subr.mxu0 0.0
    %552 = vmatpush1.msra.mxu0 0.0
    %553 = vmatprep.subr.mxu0 0.0
    %v554 = vand.u32 %v107, 4294901760
    %555 = vmatpush1.msra.mxu0 %v554
    %556 = vmatprep.subr.mxu0 0.0
    %v557 = vand.u32 %v106, 4294901760
    %558 = vmatpush1.msra.mxu0 %v557
    %559 = vmatprep.subr.mxu0 0.0
    %v560 = vand.u32 %v105, 4294901760
    %561 = vmatpush1.msra.mxu0 %v560
    %562 = vmatprep.subr.mxu0 0.0
    %v563 = vand.u32 %v104, 4294901760
    %564 = vmatpush1.msra.mxu0 %v563
    %565 = vmatprep.subr.mxu0 0.0
    %566 = vmatpush2.msra.mxu0 0.0
    %567 = vmatprep.subr.mxu0 0.0
    %568 = vmatpush2.msra.mxu0 0.0
    %569 = vmatprep.subr.mxu0 0.0
    %570 = vmatpush2.msra.mxu0 0.0
    %571 = vmatprep.subr.mxu0 0.0
    %572 = vmatpush2.msra.mxu0 0.0
    %573 = vmatprep.subr.mxu0 0.0
    %574 = vmatpush2.msra.mxu0 0.0
    %575 = vmatprep.subr.mxu0 0.0
    %576 = vmatpush2.msra.mxu0 0.0
    %577 = vmatprep.subr.mxu0 0.0
    %578 = vmatpush2.msra.mxu0 0.0
    %579 = vmatprep.subr.mxu0 0.0
    %580 = vmatpush2.msra.mxu0 0.0
    %581 = vmatprep.subr.mxu0 0.0
    %582 = vmatpush2.msra.mxu0 0.0
    %583 = vmatprep.subr.mxu0 0.0
    %584 = vmatpush2.msra.mxu0 0.0
    %585 = vmatprep.subr.mxu0 0.0
    %586 = vmatpush2.msra.mxu0 0.0
    %587 = vmatprep.subr.mxu0 0.0
    %588 = vmatpush2.msra.mxu0 0.0
    %589 = vmatprep.subr.mxu0 0.0
    %590 = vmatpush2.msra.mxu0 0.0
    %591 = vmatprep.subr.mxu0 0.0
    %592 = vmatpush2.msra.mxu0 0.0
    %593 = vmatprep.subr.mxu0 0.0
    %594 = vmatpush2.msra.mxu0 0.0
    %595 = vmatprep.subr.mxu0 0.0
    %596 = vmatpush2.msra.mxu0 0.0
    %597 = vmatprep.mubr.f32.mxu0 0.0
    %v598 = vand.u32 %v117, 4294901760
    %599 = vmatmul.mubr.f32.gmra.mxu0 %v598
    %v600 = vpop.f32.mrf.mxu0
    %v601 = vadd.f32 %v526, %v600
    %v602 = vpop.f32.mrf.mxu0
    %603 = vdwg.mxu0
    %v604 = vld [vmem:[#allocation5] sm:$0xff]
    %v605 = vld [vmem:[#allocation5 + $0x8] sm:$0xff]
    %v606 = vld [vmem:[#allocation5 + $0x10] sm:$0xff]
    %v607 = vld [vmem:[#allocation5 + $0x18] sm:$0xff]
    %v608 = vld [vmem:[#allocation5 + $0x20] sm:$0xff]
    %v609 = vld [vmem:[#allocation5 + $0x28] sm:$0xff]
    %v610 = vld [vmem:[#allocation5 + $0x30] sm:$0xff]
    %v611 = vld [vmem:[#allocation5 + $0x38] sm:$0xff]
    %v612 = vld [vmem:[#allocation7] sm:$0xff]
    %v613 = vld [vmem:[#allocation7 + $0x8] sm:$0xff]
    %v614 = vld [vmem:[#allocation7 + $0x10] sm:$0xff]
    %v615 = vld [vmem:[#allocation7 + $0x18] sm:$0xff]
    %v617 = vsel %vm115, %v604, 0
    %v620 = vsel %vm115, %v605, 0
    %v623 = vsel %vm115, %v606, 0
    %v626 = vsel %vm115, %v607, 0
    %v629 = vsel %vm115, %v608, 0
    %v632 = vsel %vm115, %v609, 0
    %v635 = vsel %vm115, %v610, 0
    %v638 = vsel %vm115, %v611, 0
    %640 = vmatprep.subr.mxu0 0.0
    %641 = vmatpush1.msra.mxu0 0.0
    %642 = vmatprep.subr.mxu0 0.0
    %643 = vmatpush1.msra.mxu0 0.0
    %644 = vmatprep.subr.mxu0 0.0
    %645 = vmatpush1.msra.mxu0 0.0
    %646 = vmatprep.subr.mxu0 0.0
    %647 = vmatpush1.msra.mxu0 0.0
    %648 = vmatprep.subr.mxu0 0.0
    %649 = vmatpush1.msra.mxu0 0.0
    %650 = vmatprep.subr.mxu0 0.0
    %651 = vmatpush1.msra.mxu0 0.0
    %652 = vmatprep.subr.mxu0 0.0
    %653 = vmatpush1.msra.mxu0 0.0
    %654 = vmatprep.subr.mxu0 0.0
    %655 = vmatpush1.msra.mxu0 0.0
    %656 = vmatprep.subr.mxu0 0.0
    %657 = vmatpush1.msra.mxu0 0.0
    %658 = vmatprep.subr.mxu0 0.0
    %659 = vmatpush1.msra.mxu0 0.0
    %660 = vmatprep.subr.mxu0 0.0
    %661 = vmatpush1.msra.mxu0 0.0
    %662 = vmatprep.subr.mxu0 0.0
    %663 = vmatpush1.msra.mxu0 0.0
    %664 = vmatprep.subr.mxu0 0.0
    %v665 = vand.u32 %v615, 4294901760
    %666 = vmatpush1.msra.mxu0 %v665
    %667 = vmatprep.subr.mxu0 0.0
    %v668 = vand.u32 %v614, 4294901760
    %669 = vmatpush1.msra.mxu0 %v668
    %670 = vmatprep.subr.mxu0 0.0
    %v671 = vand.u32 %v613, 4294901760
    %672 = vmatpush1.msra.mxu0 %v671
    %673 = vmatprep.subr.mxu0 0.0
    %v674 = vand.u32 %v612, 4294901760
    %675 = vmatpush1.msra.mxu0 %v674
    %676 = vmatprep.subr.mxu0 0.0
    %677 = vmatpush2.msra.mxu0 0.0
    %678 = vmatprep.subr.mxu0 0.0
    %679 = vmatpush2.msra.mxu0 0.0
    %680 = vmatprep.subr.mxu0 0.0
    %681 = vmatpush2.msra.mxu0 0.0
    %682 = vmatprep.subr.mxu0 0.0
    %683 = vmatpush2.msra.mxu0 0.0
    %684 = vmatprep.subr.mxu0 0.0
    %685 = vmatpush2.msra.mxu0 0.0
    %686 = vmatprep.subr.mxu0 0.0
    %687 = vmatpush2.msra.mxu0 0.0
    %688 = vmatprep.subr.mxu0 0.0
    %689 = vmatpush2.msra.mxu0 0.0
    %690 = vmatprep.subr.mxu0 0.0
    %691 = vmatpush2.msra.mxu0 0.0
    %692 = vmatprep.subr.mxu0 0.0
    %693 = vmatpush2.msra.mxu0 0.0
    %694 = vmatprep.subr.mxu0 0.0
    %695 = vmatpush2.msra.mxu0 0.0
    %696 = vmatprep.subr.mxu0 0.0
    %697 = vmatpush2.msra.mxu0 0.0
    %698 = vmatprep.subr.mxu0 0.0
    %699 = vmatpush2.msra.mxu0 0.0
    %700 = vmatprep.subr.mxu0 0.0
    %701 = vmatpush2.msra.mxu0 0.0
    %702 = vmatprep.subr.mxu0 0.0
    %703 = vmatpush2.msra.mxu0 0.0
    %704 = vmatprep.subr.mxu0 0.0
    %705 = vmatpush2.msra.mxu0 0.0
    %706 = vmatprep.subr.mxu0 0.0
    %707 = vmatpush2.msra.mxu0 0.0
    %708 = vmatprep.mubr.f32.mxu0 0.0
    %v709 = vand.u32 %v617, 4294901760
    %v710 = vsub.f32 %v617, %v709
    %v711 = vand.u32 %v710, 4294901760
    %v712 = vsub.f32 %v710, %v711
    %v713 = vand.u32 %v712, 4294901760
    %714 = vmatmul.mubr.f32.gmra.mxu0 %v713
    %v715 = vpop.f32.mrf.mxu0
    %v716 = vadd.f32 0.0, %v715
    %v717 = vpop.f32.mrf.mxu0
    %718 = vmatprep.mubr.f32.mxu0 0.0
    %v719 = vand.u32 %v620, 4294901760
    %v720 = vsub.f32 %v620, %v719
    %v721 = vand.u32 %v720, 4294901760
    %v722 = vsub.f32 %v720, %v721
    %v723 = vand.u32 %v722, 4294901760
    %724 = vmatmul.mubr.f32.gmra.mxu0 %v723
    %v725 = vpop.f32.mrf.mxu0
    %v726 = vadd.f32 0.0, %v725
    %v727 = vpop.f32.mrf.mxu0
    %728 = vmatprep.mubr.f32.mxu0 0.0
    %v729 = vand.u32 %v623, 4294901760
    %v730 = vsub.f32 %v623, %v729
    %v731 = vand.u32 %v730, 4294901760
    %v732 = vsub.f32 %v730, %v731
    %v733 = vand.u32 %v732, 4294901760
    %734 = vmatmul.mubr.f32.gmra.mxu0 %v733
    %v735 = vpop.f32.mrf.mxu0
    %v736 = vadd.f32 0.0, %v735
    %v737 = vpop.f32.mrf.mxu0
    %738 = vmatprep.mubr.f32.mxu0 0.0
    %v739 = vand.u32 %v626, 4294901760
    %v740 = vsub.f32 %v626, %v739
    %v741 = vand.u32 %v740, 4294901760
    %v742 = vsub.f32 %v740, %v741
    %v743 = vand.u32 %v742, 4294901760
    %744 = vmatmul.mubr.f32.gmra.mxu0 %v743
    %v745 = vpop.f32.mrf.mxu0
    %v746 = vadd.f32 0.0, %v745
    %v747 = vpop.f32.mrf.mxu0
    %748 = vmatprep.mubr.f32.mxu0 0.0
    %v749 = vand.u32 %v629, 4294901760
    %v750 = vsub.f32 %v629, %v749
    %v751 = vand.u32 %v750, 4294901760
    %v752 = vsub.f32 %v750, %v751
    %v753 = vand.u32 %v752, 4294901760
    %754 = vmatmul.mubr.f32.gmra.mxu0 %v753
    %v755 = vpop.f32.mrf.mxu0
    %v756 = vadd.f32 0.0, %v755
    %v757 = vpop.f32.mrf.mxu0
    %758 = vmatprep.mubr.f32.mxu0 0.0
    %v759 = vand.u32 %v632, 4294901760
    %v760 = vsub.f32 %v632, %v759
    %v761 = vand.u32 %v760, 4294901760
    %v762 = vsub.f32 %v760, %v761
    %v763 = vand.u32 %v762, 4294901760
    %764 = vmatmul.mubr.f32.gmra.mxu0 %v763
    %v765 = vpop.f32.mrf.mxu0
    %v766 = vadd.f32 0.0, %v765
    %v767 = vpop.f32.mrf.mxu0
    %768 = vmatprep.mubr.f32.mxu0 0.0
    %v769 = vand.u32 %v635, 4294901760
    %v770 = vsub.f32 %v635, %v769
    %v771 = vand.u32 %v770, 4294901760
    %v772 = vsub.f32 %v770, %v771
    %v773 = vand.u32 %v772, 4294901760
    %774 = vmatmul.mubr.f32.gmra.mxu0 %v773
    %v775 = vpop.f32.mrf.mxu0
    %v776 = vadd.f32 0.0, %v775
    %v777 = vpop.f32.mrf.mxu0
    %778 = vmatprep.mubr.f32.mxu0 0.0
    %v779 = vand.u32 %v638, 4294901760
    %v780 = vsub.f32 %v638, %v779
    %v781 = vand.u32 %v780, 4294901760
    %v782 = vsub.f32 %v780, %v781
    %v783 = vand.u32 %v782, 4294901760
    %784 = vmatmul.mubr.f32.gmra.mxu0 %v783
    %v785 = vpop.f32.mrf.mxu0
    %v786 = vadd.f32 0.0, %v785
    %v787 = vpop.f32.mrf.mxu0
    %788 = vdwg.mxu0
    %789 = vmatprep.subr.mxu0 0.0
    %790 = vmatpush1.msra.mxu0 0.0
    %791 = vmatprep.subr.mxu0 0.0
    %792 = vmatpush1.msra.mxu0 0.0
    %793 = vmatprep.subr.mxu0 0.0
    %794 = vmatpush1.msra.mxu0 0.0
    %795 = vmatprep.subr.mxu0 0.0
    %796 = vmatpush1.msra.mxu0 0.0
    %797 = vmatprep.subr.mxu0 0.0
    %798 = vmatpush1.msra.mxu0 0.0
    %799 = vmatprep.subr.mxu0 0.0
    %800 = vmatpush1.msra.mxu0 0.0
    %801 = vmatprep.subr.mxu0 0.0
    %802 = vmatpush1.msra.mxu0 0.0
    %803 = vmatprep.subr.mxu0 0.0
    %804 = vmatpush1.msra.mxu0 0.0
    %805 = vmatprep.subr.mxu0 0.0
    %806 = vmatpush1.msra.mxu0 0.0
    %807 = vmatprep.subr.mxu0 0.0
    %808 = vmatpush1.msra.mxu0 0.0
    %809 = vmatprep.subr.mxu0 0.0
    %810 = vmatpush1.msra.mxu0 0.0
    %811 = vmatprep.subr.mxu0 0.0
    %812 = vmatpush1.msra.mxu0 0.0
    %813 = vmatprep.subr.mxu0 0.0
    %v814 = vand.u32 %v615, 4294901760
    %v815 = vsub.f32 %v615, %v814
    %v816 = vand.u32 %v815, 4294901760
    %v817 = vsub.f32 %v815, %v816
    %v818 = vand.u32 %v817, 4294901760
    %819 = vmatpush1.msra.mxu0 %v818
    %820 = vmatprep.subr.mxu0 0.0
    %v821 = vand.u32 %v614, 4294901760
    %v822 = vsub.f32 %v614, %v821
    %v823 = vand.u32 %v822, 4294901760
    %v824 = vsub.f32 %v822, %v823
    %v825 = vand.u32 %v824, 4294901760
    %826 = vmatpush1.msra.mxu0 %v825
    %827 = vmatprep.subr.mxu0 0.0
    %v828 = vand.u32 %v613, 4294901760
    %v829 = vsub.f32 %v613, %v828
    %v830 = vand.u32 %v829, 4294901760
    %v831 = vsub.f32 %v829, %v830
    %v832 = vand.u32 %v831, 4294901760
    %833 = vmatpush1.msra.mxu0 %v832
    %834 = vmatprep.subr.mxu0 0.0
    %v835 = vand.u32 %v612, 4294901760
    %v836 = vsub.f32 %v612, %v835
    %v837 = vand.u32 %v836, 4294901760
    %v838 = vsub.f32 %v836, %v837
    %v839 = vand.u32 %v838, 4294901760
    %840 = vmatpush1.msra.mxu0 %v839
    %841 = vmatprep.subr.mxu0 0.0
    %842 = vmatpush2.msra.mxu0 0.0
    %843 = vmatprep.subr.mxu0 0.0
    %844 = vmatpush2.msra.mxu0 0.0
    %845 = vmatprep.subr.mxu0 0.0
    %846 = vmatpush2.msra.mxu0 0.0
    %847 = vmatprep.subr.mxu0 0.0
    %848 = vmatpush2.msra.mxu0 0.0
    %849 = vmatprep.subr.mxu0 0.0
    %850 = vmatpush2.msra.mxu0 0.0
    %851 = vmatprep.subr.mxu0 0.0
    %852 = vmatpush2.msra.mxu0 0.0
    %853 = vmatprep.subr.mxu0 0.0
    %854 = vmatpush2.msra.mxu0 0.0
    %855 = vmatprep.subr.mxu0 0.0
    %856 = vmatpush2.msra.mxu0 0.0
    %857 = vmatprep.subr.mxu0 0.0
    %858 = vmatpush2.msra.mxu0 0.0
    %859 = vmatprep.subr.mxu0 0.0
    %860 = vmatpush2.msra.mxu0 0.0
    %861 = vmatprep.subr.mxu0 0.0
    %862 = vmatpush2.msra.mxu0 0.0
    %863 = vmatprep.subr.mxu0 0.0
    %864 = vmatpush2.msra.mxu0 0.0
    %865 = vmatprep.subr.mxu0 0.0
    %866 = vmatpush2.msra.mxu0 0.0
    %867 = vmatprep.subr.mxu0 0.0
    %868 = vmatpush2.msra.mxu0 0.0
    %869 = vmatprep.subr.mxu0 0.0
    %870 = vmatpush2.msra.mxu0 0.0
    %871 = vmatprep.subr.mxu0 0.0
    %872 = vmatpush2.msra.mxu0 0.0
    %873 = vmatprep.mubr.f32.mxu0 0.0
    %v874 = vand.u32 %v617, 4294901760
    %875 = vmatmul.mubr.f32.gmra.mxu0 %v874
    %v876 = vpop.f32.mrf.mxu0
    %v877 = vadd.f32 %v716, %v876
    %v878 = vpop.f32.mrf.mxu0
    %879 = vmatprep.mubr.f32.mxu0 0.0
    %v880 = vand.u32 %v620, 4294901760
    %881 = vmatmul.mubr.f32.gmra.mxu0 %v880
    %v882 = vpop.f32.mrf.mxu0
    %v883 = vadd.f32 %v726, %v882
    %v884 = vpop.f32.mrf.mxu0
    %885 = vmatprep.mubr.f32.mxu0 0.0
    %v886 = vand.u32 %v623, 4294901760
    %887 = vmatmul.mubr.f32.gmra.mxu0 %v886
    %v888 = vpop.f32.mrf.mxu0
    %v889 = vadd.f32 %v736, %v888
    %v890 = vpop.f32.mrf.mxu0
    %891 = vmatprep.mubr.f32.mxu0 0.0
    %v892 = vand.u32 %v626, 4294901760
    %893 = vmatmul.mubr.f32.gmra.mxu0 %v892
    %v894 = vpop.f32.mrf.mxu0
    %v895 = vadd.f32 %v746, %v894
    %v896 = vpop.f32.mrf.mxu0
    %897 = vmatprep.mubr.f32.mxu0 0.0
    %v898 = vand.u32 %v629, 4294901760
    %899 = vmatmul.mubr.f32.gmra.mxu0 %v898
    %v900 = vpop.f32.mrf.mxu0
    %v901 = vadd.f32 %v756, %v900
    %v902 = vpop.f32.mrf.mxu0
    %903 = vmatprep.mubr.f32.mxu0 0.0
    %v904 = vand.u32 %v632, 4294901760
    %905 = vmatmul.mubr.f32.gmra.mxu0 %v904
    %v906 = vpop.f32.mrf.mxu0
    %v907 = vadd.f32 %v766, %v906
    %v908 = vpop.f32.mrf.mxu0
    %909 = vmatprep.mubr.f32.mxu0 0.0
    %v910 = vand.u32 %v635, 4294901760
    %911 = vmatmul.mubr.f32.gmra.mxu0 %v910
    %v912 = vpop.f32.mrf.mxu0
    %v913 = vadd.f32 %v776, %v912
    %v914 = vpop.f32.mrf.mxu0
    %915 = vmatprep.mubr.f32.mxu0 0.0
    %v916 = vand.u32 %v638, 4294901760
    %917 = vmatmul.mubr.f32.gmra.mxu0 %v916
    %v918 = vpop.f32.mrf.mxu0
    %v919 = vadd.f32 %v786, %v918
    %v920 = vpop.f32.mrf.mxu0
    %921 = vdwg.mxu0
    %922 = vmatprep.subr.mxu0 0.0
    %923 = vmatpush1.msra.mxu0 0.0
    %924 = vmatprep.subr.mxu0 0.0
    %925 = vmatpush1.msra.mxu0 0.0
    %926 = vmatprep.subr.mxu0 0.0
    %927 = vmatpush1.msra.mxu0 0.0
    %928 = vmatprep.subr.mxu0 0.0
    %929 = vmatpush1.msra.mxu0 0.0
    %930 = vmatprep.subr.mxu0 0.0
    %931 = vmatpush1.msra.mxu0 0.0
    %932 = vmatprep.subr.mxu0 0.0
    %933 = vmatpush1.msra.mxu0 0.0
    %934 = vmatprep.subr.mxu0 0.0
    %935 = vmatpush1.msra.mxu0 0.0
    %936 = vmatprep.subr.mxu0 0.0
    %937 = vmatpush1.msra.mxu0 0.0
    %938 = vmatprep.subr.mxu0 0.0
    %939 = vmatpush1.msra.mxu0 0.0
    %940 = vmatprep.subr.mxu0 0.0
    %941 = vmatpush1.msra.mxu0 0.0
    %942 = vmatprep.subr.mxu0 0.0
    %943 = vmatpush1.msra.mxu0 0.0
    %944 = vmatprep.subr.mxu0 0.0
    %945 = vmatpush1.msra.mxu0 0.0
    %946 = vmatprep.subr.mxu0 0.0
    %v947 = vand.u32 %v615, 4294901760
    %v948 = vsub.f32 %v615, %v947
    %949 = vmatpush1.msra.mxu0 %v948
    %950 = vmatprep.subr.mxu0 0.0
    %v951 = vand.u32 %v614, 4294901760
    %v952 = vsub.f32 %v614, %v951
    %953 = vmatpush1.msra.mxu0 %v952
    %954 = vmatprep.subr.mxu0 0.0
    %v955 = vand.u32 %v613, 4294901760
    %v956 = vsub.f32 %v613, %v955
    %957 = vmatpush1.msra.mxu0 %v956
    %958 = vmatprep.subr.mxu0 0.0
    %v959 = vand.u32 %v612, 4294901760
    %v960 = vsub.f32 %v612, %v959
    %961 = vmatpush1.msra.mxu0 %v960
    %962 = vmatprep.subr.mxu0 0.0
    %963 = vmatpush2.msra.mxu0 0.0
    %964 = vmatprep.subr.mxu0 0.0
    %965 = vmatpush2.msra.mxu0 0.0
    %966 = vmatprep.subr.mxu0 0.0
    %967 = vmatpush2.msra.mxu0 0.0
    %968 = vmatprep.subr.mxu0 0.0
    %969 = vmatpush2.msra.mxu0 0.0
    %970 = vmatprep.subr.mxu0 0.0
    %971 = vmatpush2.msra.mxu0 0.0
    %972 = vmatprep.subr.mxu0 0.0
    %973 = vmatpush2.msra.mxu0 0.0
    %974 = vmatprep.subr.mxu0 0.0
    %975 = vmatpush2.msra.mxu0 0.0
    %976 = vmatprep.subr.mxu0 0.0
    %977 = vmatpush2.msra.mxu0 0.0
    %978 = vmatprep.subr.mxu0 0.0
    %979 = vmatpush2.msra.mxu0 0.0
    %980 = vmatprep.subr.mxu0 0.0
    %981 = vmatpush2.msra.mxu0 0.0
    %982 = vmatprep.subr.mxu0 0.0
    %983 = vmatpush2.msra.mxu0 0.0
    %984 = vmatprep.subr.mxu0 0.0
    %985 = vmatpush2.msra.mxu0 0.0
    %986 = vmatprep.subr.mxu0 0.0
    %987 = vmatpush2.msra.mxu0 0.0
    %988 = vmatprep.subr.mxu0 0.0
    %989 = vmatpush2.msra.mxu0 0.0
    %990 = vmatprep.subr.mxu0 0.0
    %991 = vmatpush2.msra.mxu0 0.0
    %992 = vmatprep.subr.mxu0 0.0
    %993 = vmatpush2.msra.mxu0 0.0
    %994 = vmatprep.mubr.f32.mxu0 0.0
    %v995 = vand.u32 %v617, 4294901760
    %v996 = vsub.f32 %v617, %v995
    %997 = vmatmul.mubr.f32.gmra.mxu0 %v996
    %v998 = vpop.f32.mrf.mxu0
    %v999 = vadd.f32 %v877, %v998
    %v1000 = vpop.f32.mrf.mxu0
    %1001 = vmatprep.mubr.f32.mxu0 0.0
    %v1002 = vand.u32 %v620, 4294901760
    %v1003 = vsub.f32 %v620, %v1002
    %1004 = vmatmul.mubr.f32.gmra.mxu0 %v1003
    %v1005 = vpop.f32.mrf.mxu0
    %v1006 = vadd.f32 %v883, %v1005
    %v1007 = vpop.f32.mrf.mxu0
    %1008 = vmatprep.mubr.f32.mxu0 0.0
    %v1009 = vand.u32 %v623, 4294901760
    %v1010 = vsub.f32 %v623, %v1009
    %1011 = vmatmul.mubr.f32.gmra.mxu0 %v1010
    %v1012 = vpop.f32.mrf.mxu0
    %v1013 = vadd.f32 %v889, %v1012
    %v1014 = vpop.f32.mrf.mxu0
    %1015 = vmatprep.mubr.f32.mxu0 0.0
    %v1016 = vand.u32 %v626, 4294901760
    %v1017 = vsub.f32 %v626, %v1016
    %1018 = vmatmul.mubr.f32.gmra.mxu0 %v1017
    %v1019 = vpop.f32.mrf.mxu0
    %v1020 = vadd.f32 %v895, %v1019
    %v1021 = vpop.f32.mrf.mxu0
    %1022 = vmatprep.mubr.f32.mxu0 0.0
    %v1023 = vand.u32 %v629, 4294901760
    %v1024 = vsub.f32 %v629, %v1023
    %1025 = vmatmul.mubr.f32.gmra.mxu0 %v1024
    %v1026 = vpop.f32.mrf.mxu0
    %v1027 = vadd.f32 %v901, %v1026
    %v1028 = vpop.f32.mrf.mxu0
    %1029 = vmatprep.mubr.f32.mxu0 0.0
    %v1030 = vand.u32 %v632, 4294901760
    %v1031 = vsub.f32 %v632, %v1030
    %1032 = vmatmul.mubr.f32.gmra.mxu0 %v1031
    %v1033 = vpop.f32.mrf.mxu0
    %v1034 = vadd.f32 %v907, %v1033
    %v1035 = vpop.f32.mrf.mxu0
    %1036 = vmatprep.mubr.f32.mxu0 0.0
    %v1037 = vand.u32 %v635, 4294901760
    %v1038 = vsub.f32 %v635, %v1037
    %1039 = vmatmul.mubr.f32.gmra.mxu0 %v1038
    %v1040 = vpop.f32.mrf.mxu0
    %v1041 = vadd.f32 %v913, %v1040
    %v1042 = vpop.f32.mrf.mxu0
    %1043 = vmatprep.mubr.f32.mxu0 0.0
    %v1044 = vand.u32 %v638, 4294901760
    %v1045 = vsub.f32 %v638, %v1044
    %1046 = vmatmul.mubr.f32.gmra.mxu0 %v1045
    %v1047 = vpop.f32.mrf.mxu0
    %v1048 = vadd.f32 %v919, %v1047
    %v1049 = vpop.f32.mrf.mxu0
    %1050 = vdwg.mxu0
    %1051 = vmatprep.subr.mxu0 0.0
    %1052 = vmatpush1.msra.mxu0 0.0
    %1053 = vmatprep.subr.mxu0 0.0
    %1054 = vmatpush1.msra.mxu0 0.0
    %1055 = vmatprep.subr.mxu0 0.0
    %1056 = vmatpush1.msra.mxu0 0.0
    %1057 = vmatprep.subr.mxu0 0.0
    %1058 = vmatpush1.msra.mxu0 0.0
    %1059 = vmatprep.subr.mxu0 0.0
    %1060 = vmatpush1.msra.mxu0 0.0
    %1061 = vmatprep.subr.mxu0 0.0
    %1062 = vmatpush1.msra.mxu0 0.0
    %1063 = vmatprep.subr.mxu0 0.0
    %1064 = vmatpush1.msra.mxu0 0.0
    %1065 = vmatprep.subr.mxu0 0.0
    %1066 = vmatpush1.msra.mxu0 0.0
    %1067 = vmatprep.subr.mxu0 0.0
    %1068 = vmatpush1.msra.mxu0 0.0
    %1069 = vmatprep.subr.mxu0 0.0
    %1070 = vmatpush1.msra.mxu0 0.0
    %1071 = vmatprep.subr.mxu0 0.0
    %1072 = vmatpush1.msra.mxu0 0.0
    %1073 = vmatprep.subr.mxu0 0.0
    %1074 = vmatpush1.msra.mxu0 0.0
    %1075 = vmatprep.subr.mxu0 0.0
    %v1076 = vand.u32 %v615, 4294901760
    %1077 = vmatpush1.msra.mxu0 %v1076
    %1078 = vmatprep.subr.mxu0 0.0
    %v1079 = vand.u32 %v614, 4294901760
    %1080 = vmatpush1.msra.mxu0 %v1079
    %1081 = vmatprep.subr.mxu0 0.0
    %v1082 = vand.u32 %v613, 4294901760
    %1083 = vmatpush1.msra.mxu0 %v1082
    %1084 = vmatprep.subr.mxu0 0.0
    %v1085 = vand.u32 %v612, 4294901760
    %1086 = vmatpush1.msra.mxu0 %v1085
    %1087 = vmatprep.subr.mxu0 0.0
    %1088 = vmatpush2.msra.mxu0 0.0
    %1089 = vmatprep.subr.mxu0 0.0
    %1090 = vmatpush2.msra.mxu0 0.0
    %1091 = vmatprep.subr.mxu0 0.0
    %1092 = vmatpush2.msra.mxu0 0.0
    %1093 = vmatprep.subr.mxu0 0.0
    %1094 = vmatpush2.msra.mxu0 0.0
    %1095 = vmatprep.subr.mxu0 0.0
    %1096 = vmatpush2.msra.mxu0 0.0
    %1097 = vmatprep.subr.mxu0 0.0
    %1098 = vmatpush2.msra.mxu0 0.0
    %1099 = vmatprep.subr.mxu0 0.0
    %1100 = vmatpush2.msra.mxu0 0.0
    %1101 = vmatprep.subr.mxu0 0.0
    %1102 = vmatpush2.msra.mxu0 0.0
    %1103 = vmatprep.subr.mxu0 0.0
    %1104 = vmatpush2.msra.mxu0 0.0
    %1105 = vmatprep.subr.mxu0 0.0
    %1106 = vmatpush2.msra.mxu0 0.0
    %1107 = vmatprep.subr.mxu0 0.0
    %1108 = vmatpush2.msra.mxu0 0.0
    %1109 = vmatprep.subr.mxu0 0.0
    %1110 = vmatpush2.msra.mxu0 0.0
    %1111 = vmatprep.subr.mxu0 0.0
    %1112 = vmatpush2.msra.mxu0 0.0
    %1113 = vmatprep.subr.mxu0 0.0
    %1114 = vmatpush2.msra.mxu0 0.0
    %1115 = vmatprep.subr.mxu0 0.0
    %1116 = vmatpush2.msra.mxu0 0.0
    %1117 = vmatprep.subr.mxu0 0.0
    %1118 = vmatpush2.msra.mxu0 0.0
    %1119 = vmatprep.mubr.f32.mxu0 0.0
    %v1120 = vand.u32 %v617, 4294901760
    %v1121 = vsub.f32 %v617, %v1120
    %v1122 = vand.u32 %v1121, 4294901760
    %1123 = vmatmul.mubr.f32.gmra.mxu0 %v1122
    %v1124 = vpop.f32.mrf.mxu0
    %v1125 = vadd.f32 %v999, %v1124
    %v1126 = vpop.f32.mrf.mxu0
    %1127 = vmatprep.mubr.f32.mxu0 0.0
    %v1128 = vand.u32 %v620, 4294901760
    %v1129 = vsub.f32 %v620, %v1128
    %v1130 = vand.u32 %v1129, 4294901760
    %1131 = vmatmul.mubr.f32.gmra.mxu0 %v1130
    %v1132 = vpop.f32.mrf.mxu0
    %v1133 = vadd.f32 %v1006, %v1132
    %v1134 = vpop.f32.mrf.mxu0
    %1135 = vmatprep.mubr.f32.mxu0 0.0
    %v1136 = vand.u32 %v623, 4294901760
    %v1137 = vsub.f32 %v623, %v1136
    %v1138 = vand.u32 %v1137, 4294901760
    %1139 = vmatmul.mubr.f32.gmra.mxu0 %v1138
    %v1140 = vpop.f32.mrf.mxu0
    %v1141 = vadd.f32 %v1013, %v1140
    %v1142 = vpop.f32.mrf.mxu0
    %1143 = vmatprep.mubr.f32.mxu0 0.0
    %v1144 = vand.u32 %v626, 4294901760
    %v1145 = vsub.f32 %v626, %v1144
    %v1146 = vand.u32 %v1145, 4294901760
    %1147 = vmatmul.mubr.f32.gmra.mxu0 %v1146
    %v1148 = vpop.f32.mrf.mxu0
    %v1149 = vadd.f32 %v1020, %v1148
    %v1150 = vpop.f32.mrf.mxu0
    %1151 = vmatprep.mubr.f32.mxu0 0.0
    %v1152 = vand.u32 %v629, 4294901760
    %v1153 = vsub.f32 %v629, %v1152
    %v1154 = vand.u32 %v1153, 4294901760
    %1155 = vmatmul.mubr.f32.gmra.mxu0 %v1154
    %v1156 = vpop.f32.mrf.mxu0
    %v1157 = vadd.f32 %v1027, %v1156
    %v1158 = vpop.f32.mrf.mxu0
    %1159 = vmatprep.mubr.f32.mxu0 0.0
    %v1160 = vand.u32 %v632, 4294901760
    %v1161 = vsub.f32 %v632, %v1160
    %v1162 = vand.u32 %v1161, 4294901760
    %1163 = vmatmul.mubr.f32.gmra.mxu0 %v1162
    %v1164 = vpop.f32.mrf.mxu0
    %v1165 = vadd.f32 %v1034, %v1164
    %v1166 = vpop.f32.mrf.mxu0
    %1167 = vmatprep.mubr.f32.mxu0 0.0
    %v1168 = vand.u32 %v635, 4294901760
    %v1169 = vsub.f32 %v635, %v1168
    %v1170 = vand.u32 %v1169, 4294901760
    %1171 = vmatmul.mubr.f32.gmra.mxu0 %v1170
    %v1172 = vpop.f32.mrf.mxu0
    %v1173 = vadd.f32 %v1041, %v1172
    %v1174 = vpop.f32.mrf.mxu0
    %1175 = vmatprep.mubr.f32.mxu0 0.0
    %v1176 = vand.u32 %v638, 4294901760
    %v1177 = vsub.f32 %v638, %v1176
    %v1178 = vand.u32 %v1177, 4294901760
    %1179 = vmatmul.mubr.f32.gmra.mxu0 %v1178
    %v1180 = vpop.f32.mrf.mxu0
    %v1181 = vadd.f32 %v1048, %v1180
    %v1182 = vpop.f32.mrf.mxu0
    %1183 = vdwg.mxu0
    %1184 = vmatprep.subr.mxu0 0.0
    %1185 = vmatpush1.msra.mxu0 0.0
    %1186 = vmatprep.subr.mxu0 0.0
    %1187 = vmatpush1.msra.mxu0 0.0
    %1188 = vmatprep.subr.mxu0 0.0
    %1189 = vmatpush1.msra.mxu0 0.0
    %1190 = vmatprep.subr.mxu0 0.0
    %1191 = vmatpush1.msra.mxu0 0.0
    %1192 = vmatprep.subr.mxu0 0.0
    %1193 = vmatpush1.msra.mxu0 0.0
    %1194 = vmatprep.subr.mxu0 0.0
    %1195 = vmatpush1.msra.mxu0 0.0
    %1196 = vmatprep.subr.mxu0 0.0
    %1197 = vmatpush1.msra.mxu0 0.0
    %1198 = vmatprep.subr.mxu0 0.0
    %1199 = vmatpush1.msra.mxu0 0.0
    %1200 = vmatprep.subr.mxu0 0.0
    %1201 = vmatpush1.msra.mxu0 0.0
    %1202 = vmatprep.subr.mxu0 0.0
    %1203 = vmatpush1.msra.mxu0 0.0
    %1204 = vmatprep.subr.mxu0 0.0
    %1205 = vmatpush1.msra.mxu0 0.0
    %1206 = vmatprep.subr.mxu0 0.0
    %1207 = vmatpush1.msra.mxu0 0.0
    %1208 = vmatprep.subr.mxu0 0.0
    %v1209 = vand.u32 %v615, 4294901760
    %v1210 = vsub.f32 %v615, %v1209
    %v1211 = vand.u32 %v1210, 4294901760
    %1212 = vmatpush1.msra.mxu0 %v1211
    %1213 = vmatprep.subr.mxu0 0.0
    %v1214 = vand.u32 %v614, 4294901760
    %v1215 = vsub.f32 %v614, %v1214
    %v1216 = vand.u32 %v1215, 4294901760
    %1217 = vmatpush1.msra.mxu0 %v1216
    %1218 = vmatprep.subr.mxu0 0.0
    %v1219 = vand.u32 %v613, 4294901760
    %v1220 = vsub.f32 %v613, %v1219
    %v1221 = vand.u32 %v1220, 4294901760
    %1222 = vmatpush1.msra.mxu0 %v1221
    %1223 = vmatprep.subr.mxu0 0.0
    %v1224 = vand.u32 %v612, 4294901760
    %v1225 = vsub.f32 %v612, %v1224
    %v1226 = vand.u32 %v1225, 4294901760
    %1227 = vmatpush1.msra.mxu0 %v1226
    %1228 = vmatprep.subr.mxu0 0.0
    %1229 = vmatpush2.msra.mxu0 0.0
    %1230 = vmatprep.subr.mxu0 0.0
    %1231 = vmatpush2.msra.mxu0 0.0
    %1232 = vmatprep.subr.mxu0 0.0
    %1233 = vmatpush2.msra.mxu0 0.0
    %1234 = vmatprep.subr.mxu0 0.0
    %1235 = vmatpush2.msra.mxu0 0.0
    %1236 = vmatprep.subr.mxu0 0.0
    %1237 = vmatpush2.msra.mxu0 0.0
    %1238 = vmatprep.subr.mxu0 0.0
    %1239 = vmatpush2.msra.mxu0 0.0
    %1240 = vmatprep.subr.mxu0 0.0
    %1241 = vmatpush2.msra.mxu0 0.0
    %1242 = vmatprep.subr.mxu0 0.0
    %1243 = vmatpush2.msra.mxu0 0.0
    %1244 = vmatprep.subr.mxu0 0.0
    %1245 = vmatpush2.msra.mxu0 0.0
    %1246 = vmatprep.subr.mxu0 0.0
    %1247 = vmatpush2.msra.mxu0 0.0
    %1248 = vmatprep.subr.mxu0 0.0
    %1249 = vmatpush2.msra.mxu0 0.0
    %1250 = vmatprep.subr.mxu0 0.0
    %1251 = vmatpush2.msra.mxu0 0.0
    %1252 = vmatprep.subr.mxu0 0.0
    %1253 = vmatpush2.msra.mxu0 0.0
    %1254 = vmatprep.subr.mxu0 0.0
    %1255 = vmatpush2.msra.mxu0 0.0
    %1256 = vmatprep.subr.mxu0 0.0
    %1257 = vmatpush2.msra.mxu0 0.0
    %1258 = vmatprep.subr.mxu0 0.0
    %1259 = vmatpush2.msra.mxu0 0.0
    %1260 = vmatprep.mubr.f32.mxu0 0.0
    %v1261 = vand.u32 %v617, 4294901760
    %1262 = vmatmul.mubr.f32.gmra.mxu0 %v1261
    %v1263 = vpop.f32.mrf.mxu0
    %v1264 = vadd.f32 %v1125, %v1263
    %v1265 = vpop.f32.mrf.mxu0
    %1266 = vmatprep.mubr.f32.mxu0 0.0
    %v1267 = vand.u32 %v620, 4294901760
    %1268 = vmatmul.mubr.f32.gmra.mxu0 %v1267
    %v1269 = vpop.f32.mrf.mxu0
    %v1270 = vadd.f32 %v1133, %v1269
    %v1271 = vpop.f32.mrf.mxu0
    %1272 = vmatprep.mubr.f32.mxu0 0.0
    %v1273 = vand.u32 %v623, 4294901760
    %1274 = vmatmul.mubr.f32.gmra.mxu0 %v1273
    %v1275 = vpop.f32.mrf.mxu0
    %v1276 = vadd.f32 %v1141, %v1275
    %v1277 = vpop.f32.mrf.mxu0
    %1278 = vmatprep.mubr.f32.mxu0 0.0
    %v1279 = vand.u32 %v626, 4294901760
    %1280 = vmatmul.mubr.f32.gmra.mxu0 %v1279
    %v1281 = vpop.f32.mrf.mxu0
    %v1282 = vadd.f32 %v1149, %v1281
    %v1283 = vpop.f32.mrf.mxu0
    %1284 = vmatprep.mubr.f32.mxu0 0.0
    %v1285 = vand.u32 %v629, 4294901760
    %1286 = vmatmul.mubr.f32.gmra.mxu0 %v1285
    %v1287 = vpop.f32.mrf.mxu0
    %v1288 = vadd.f32 %v1157, %v1287
    %v1289 = vpop.f32.mrf.mxu0
    %1290 = vmatprep.mubr.f32.mxu0 0.0
    %v1291 = vand.u32 %v632, 4294901760
    %1292 = vmatmul.mubr.f32.gmra.mxu0 %v1291
    %v1293 = vpop.f32.mrf.mxu0
    %v1294 = vadd.f32 %v1165, %v1293
    %v1295 = vpop.f32.mrf.mxu0
    %1296 = vmatprep.mubr.f32.mxu0 0.0
    %v1297 = vand.u32 %v635, 4294901760
    %1298 = vmatmul.mubr.f32.gmra.mxu0 %v1297
    %v1299 = vpop.f32.mrf.mxu0
    %v1300 = vadd.f32 %v1173, %v1299
    %v1301 = vpop.f32.mrf.mxu0
    %1302 = vmatprep.mubr.f32.mxu0 0.0
    %v1303 = vand.u32 %v638, 4294901760
    %1304 = vmatmul.mubr.f32.gmra.mxu0 %v1303
    %v1305 = vpop.f32.mrf.mxu0
    %v1306 = vadd.f32 %v1181, %v1305
    %v1307 = vpop.f32.mrf.mxu0
    %1308 = vdwg.mxu0
    %1309 = vmatprep.subr.mxu0 0.0
    %1310 = vmatpush1.msra.mxu0 0.0
    %1311 = vmatprep.subr.mxu0 0.0
    %1312 = vmatpush1.msra.mxu0 0.0
    %1313 = vmatprep.subr.mxu0 0.0
    %1314 = vmatpush1.msra.mxu0 0.0
    %1315 = vmatprep.subr.mxu0 0.0
    %1316 = vmatpush1.msra.mxu0 0.0
    %1317 = vmatprep.subr.mxu0 0.0
    %1318 = vmatpush1.msra.mxu0 0.0
    %1319 = vmatprep.subr.mxu0 0.0
    %1320 = vmatpush1.msra.mxu0 0.0
    %1321 = vmatprep.subr.mxu0 0.0
    %1322 = vmatpush1.msra.mxu0 0.0
    %1323 = vmatprep.subr.mxu0 0.0
    %1324 = vmatpush1.msra.mxu0 0.0
    %1325 = vmatprep.subr.mxu0 0.0
    %1326 = vmatpush1.msra.mxu0 0.0
    %1327 = vmatprep.subr.mxu0 0.0
    %1328 = vmatpush1.msra.mxu0 0.0
    %1329 = vmatprep.subr.mxu0 0.0
    %1330 = vmatpush1.msra.mxu0 0.0
    %1331 = vmatprep.subr.mxu0 0.0
    %1332 = vmatpush1.msra.mxu0 0.0
    %1333 = vmatprep.subr.mxu0 0.0
    %v1334 = vand.u32 %v615, 4294901760
    %1335 = vmatpush1.msra.mxu0 %v1334
    %1336 = vmatprep.subr.mxu0 0.0
    %v1337 = vand.u32 %v614, 4294901760
    %1338 = vmatpush1.msra.mxu0 %v1337
    %1339 = vmatprep.subr.mxu0 0.0
    %v1340 = vand.u32 %v613, 4294901760
    %1341 = vmatpush1.msra.mxu0 %v1340
    %1342 = vmatprep.subr.mxu0 0.0
    %v1343 = vand.u32 %v612, 4294901760
    %1344 = vmatpush1.msra.mxu0 %v1343
    %1345 = vmatprep.subr.mxu0 0.0
    %1346 = vmatpush2.msra.mxu0 0.0
    %1347 = vmatprep.subr.mxu0 0.0
    %1348 = vmatpush2.msra.mxu0 0.0
    %1349 = vmatprep.subr.mxu0 0.0
    %1350 = vmatpush2.msra.mxu0 0.0
    %1351 = vmatprep.subr.mxu0 0.0
    %1352 = vmatpush2.msra.mxu0 0.0
    %1353 = vmatprep.subr.mxu0 0.0
    %1354 = vmatpush2.msra.mxu0 0.0
    %1355 = vmatprep.subr.mxu0 0.0
    %1356 = vmatpush2.msra.mxu0 0.0
    %1357 = vmatprep.subr.mxu0 0.0
    %1358 = vmatpush2.msra.mxu0 0.0
    %1359 = vmatprep.subr.mxu0 0.0
    %1360 = vmatpush2.msra.mxu0 0.0
    %1361 = vmatprep.subr.mxu0 0.0
    %1362 = vmatpush2.msra.mxu0 0.0
    %1363 = vmatprep.subr.mxu0 0.0
    %1364 = vmatpush2.msra.mxu0 0.0
    %1365 = vmatprep.subr.mxu0 0.0
    %1366 = vmatpush2.msra.mxu0 0.0
    %1367 = vmatprep.subr.mxu0 0.0
    %1368 = vmatpush2.msra.mxu0 0.0
    %1369 = vmatprep.subr.mxu0 0.0
    %1370 = vmatpush2.msra.mxu0 0.0
    %1371 = vmatprep.subr.mxu0 0.0
    %1372 = vmatpush2.msra.mxu0 0.0
    %1373 = vmatprep.subr.mxu0 0.0
    %1374 = vmatpush2.msra.mxu0 0.0
    %1375 = vmatprep.subr.mxu0 0.0
    %1376 = vmatpush2.msra.mxu0 0.0
    %1377 = vmatprep.mubr.f32.mxu0 0.0
    %v1378 = vand.u32 %v617, 4294901760
    %1379 = vmatmul.mubr.f32.gmra.mxu0 %v1378
    %v1380 = vpop.f32.mrf.mxu0
    %v1381 = vadd.f32 %v1264, %v1380
    %v1382 = vpop.f32.mrf.mxu0
    %1383 = vmatprep.mubr.f32.mxu0 0.0
    %v1384 = vand.u32 %v620, 4294901760
    %1385 = vmatmul.mubr.f32.gmra.mxu0 %v1384
    %v1386 = vpop.f32.mrf.mxu0
    %v1387 = vadd.f32 %v1270, %v1386
    %v1388 = vpop.f32.mrf.mxu0
    %1389 = vmatprep.mubr.f32.mxu0 0.0
    %v1390 = vand.u32 %v623, 4294901760
    %1391 = vmatmul.mubr.f32.gmra.mxu0 %v1390
    %v1392 = vpop.f32.mrf.mxu0
    %v1393 = vadd.f32 %v1276, %v1392
    %v1394 = vpop.f32.mrf.mxu0
    %1395 = vmatprep.mubr.f32.mxu0 0.0
    %v1396 = vand.u32 %v626, 4294901760
    %1397 = vmatmul.mubr.f32.gmra.mxu0 %v1396
    %v1398 = vpop.f32.mrf.mxu0
    %v1399 = vadd.f32 %v1282, %v1398
    %v1400 = vpop.f32.mrf.mxu0
    %1401 = vmatprep.mubr.f32.mxu0 0.0
    %v1402 = vand.u32 %v629, 4294901760
    %1403 = vmatmul.mubr.f32.gmra.mxu0 %v1402
    %v1404 = vpop.f32.mrf.mxu0
    %v1405 = vadd.f32 %v1288, %v1404
    %v1406 = vpop.f32.mrf.mxu0
    %1407 = vmatprep.mubr.f32.mxu0 0.0
    %v1408 = vand.u32 %v632, 4294901760
    %1409 = vmatmul.mubr.f32.gmra.mxu0 %v1408
    %v1410 = vpop.f32.mrf.mxu0
    %v1411 = vadd.f32 %v1294, %v1410
    %v1412 = vpop.f32.mrf.mxu0
    %1413 = vmatprep.mubr.f32.mxu0 0.0
    %v1414 = vand.u32 %v635, 4294901760
    %1415 = vmatmul.mubr.f32.gmra.mxu0 %v1414
    %v1416 = vpop.f32.mrf.mxu0
    %v1417 = vadd.f32 %v1300, %v1416
    %v1418 = vpop.f32.mrf.mxu0
    %1419 = vmatprep.mubr.f32.mxu0 0.0
    %v1420 = vand.u32 %v638, 4294901760
    %1421 = vmatmul.mubr.f32.gmra.mxu0 %v1420
    %v1422 = vpop.f32.mrf.mxu0
    %v1423 = vadd.f32 %v1306, %v1422
    %v1424 = vpop.f32.mrf.mxu0
    %1425 = vdwg.mxu0
    %v1426 = vadd.f32 %v1381, %v601
    %v1427 = vadd.f32 %v1387, %v601
    %v1428 = vadd.f32 %v1393, %v601
    %v1429 = vadd.f32 %v1399, %v601
    %v1430 = vadd.f32 %v1405, %v601
    %v1431 = vadd.f32 %v1411, %v601
    %v1432 = vadd.f32 %v1417, %v601
    %v1433 = vadd.f32 %v1423, %v601
    %v1434 = vtanh.pop %v1426
    %v1435 = vtanh.pop %v1427
    %v1436 = vtanh.pop %v1428
    %v1437 = vtanh.pop %v1429
    %v1438 = vtanh.pop %v1430
    %v1439 = vtanh.pop %v1431
    %v1440 = vtanh.pop %v1432
    %v1441 = vtanh.pop %v1433
    %v1442 = vld [vmem:[%s5] sm:$0xff]
    %v1443 = vld [vmem:[%s5 + $0x8] sm:$0xff]
    %v1444 = vld [vmem:[%s5 + $0x10] sm:$0xff]
    %v1445 = vld [vmem:[%s5 + $0x18] sm:$0xff]
    %v1447 = vsel %vm115, %v1434, 0
    %v1450 = vsel %vm115, %v1435, 0
    %v1453 = vsel %vm115, %v1436, 0
    %v1456 = vsel %vm115, %v1437, 0
    %v1459 = vsel %vm115, %v1438, 0
    %v1462 = vsel %vm115, %v1439, 0
    %v1465 = vsel %vm115, %v1440, 0
    %v1468 = vsel %vm115, %v1441, 0
    %1470 = vmatprep.subr.mxu0 0.0
    %1471 = vmatpush1.msra.mxu0 0.0
    %1472 = vmatprep.subr.mxu0 0.0
    %1473 = vmatpush1.msra.mxu0 0.0
    %1474 = vmatprep.subr.mxu0 0.0
    %1475 = vmatpush1.msra.mxu0 0.0
    %1476 = vmatprep.subr.mxu0 0.0
    %1477 = vmatpush1.msra.mxu0 0.0
    %1478 = vmatprep.subr.mxu0 0.0
    %1479 = vmatpush1.msra.mxu0 0.0
    %1480 = vmatprep.subr.mxu0 0.0
    %1481 = vmatpush1.msra.mxu0 0.0
    %1482 = vmatprep.subr.mxu0 0.0
    %1483 = vmatpush1.msra.mxu0 0.0
    %1484 = vmatprep.subr.mxu0 0.0
    %1485 = vmatpush1.msra.mxu0 0.0
    %1486 = vmatprep.subr.mxu0 0.0
    %1487 = vmatpush1.msra.mxu0 0.0
    %1488 = vmatprep.subr.mxu0 0.0
    %1489 = vmatpush1.msra.mxu0 0.0
    %1490 = vmatprep.subr.mxu0 0.0
    %1491 = vmatpush1.msra.mxu0 0.0
    %1492 = vmatprep.subr.mxu0 0.0
    %1493 = vmatpush1.msra.mxu0 0.0
    %1494 = vmatprep.subr.mxu0 0.0
    %v1495 = vand.u32 %v1445, 4294901760
    %1496 = vmatpush1.msra.mxu0 %v1495
    %1497 = vmatprep.subr.mxu0 0.0
    %v1498 = vand.u32 %v1444, 4294901760
    %1499 = vmatpush1.msra.mxu0 %v1498
    %1500 = vmatprep.subr.mxu0 0.0
    %v1501 = vand.u32 %v1443, 4294901760
    %1502 = vmatpush1.msra.mxu0 %v1501
    %1503 = vmatprep.subr.mxu0 0.0
    %v1504 = vand.u32 %v1442, 4294901760
    %1505 = vmatpush1.msra.mxu0 %v1504
    %1506 = vmatprep.subr.mxu0 0.0
    %1507 = vmatpush2.msra.mxu0 0.0
    %1508 = vmatprep.subr.mxu0 0.0
    %1509 = vmatpush2.msra.mxu0 0.0
    %1510 = vmatprep.subr.mxu0 0.0
    %1511 = vmatpush2.msra.mxu0 0.0
    %1512 = vmatprep.subr.mxu0 0.0
    %1513 = vmatpush2.msra.mxu0 0.0
    %1514 = vmatprep.subr.mxu0 0.0
    %1515 = vmatpush2.msra.mxu0 0.0
    %1516 = vmatprep.subr.mxu0 0.0
    %1517 = vmatpush2.msra.mxu0 0.0
    %1518 = vmatprep.subr.mxu0 0.0
    %1519 = vmatpush2.msra.mxu0 0.0
    %1520 = vmatprep.subr.mxu0 0.0
    %1521 = vmatpush2.msra.mxu0 0.0
    %1522 = vmatprep.subr.mxu0 0.0
    %1523 = vmatpush2.msra.mxu0 0.0
    %1524 = vmatprep.subr.mxu0 0.0
    %1525 = vmatpush2.msra.mxu0 0.0
    %1526 = vmatprep.subr.mxu0 0.0
    %1527 = vmatpush2.msra.mxu0 0.0
    %1528 = vmatprep.subr.mxu0 0.0
    %1529 = vmatpush2.msra.mxu0 0.0
    %1530 = vmatprep.subr.mxu0 0.0
    %1531 = vmatpush2.msra.mxu0 0.0
    %1532 = vmatprep.subr.mxu0 0.0
    %1533 = vmatpush2.msra.mxu0 0.0
    %1534 = vmatprep.subr.mxu0 0.0
    %1535 = vmatpush2.msra.mxu0 0.0
    %1536 = vmatprep.subr.mxu0 0.0
    %1537 = vmatpush2.msra.mxu0 0.0
    %1538 = vmatprep.mubr.f32.mxu0 0.0
    %v1539 = vand.u32 %v1447, 4294901760
    %v1540 = vsub.f32 %v1447, %v1539
    %v1541 = vand.u32 %v1540, 4294901760
    %v1542 = vsub.f32 %v1540, %v1541
    %v1543 = vand.u32 %v1542, 4294901760
    %1544 = vmatmul.mubr.f32.gmra.mxu0 %v1543
    %v1545 = vpop.f32.mrf.mxu0
    %v1546 = vadd.f32 0.0, %v1545
    %v1547 = vpop.f32.mrf.mxu0
    %1548 = vmatprep.mubr.f32.mxu0 0.0
    %v1549 = vand.u32 %v1450, 4294901760
    %v1550 = vsub.f32 %v1450, %v1549
    %v1551 = vand.u32 %v1550, 4294901760
    %v1552 = vsub.f32 %v1550, %v1551
    %v1553 = vand.u32 %v1552, 4294901760
    %1554 = vmatmul.mubr.f32.gmra.mxu0 %v1553
    %v1555 = vpop.f32.mrf.mxu0
    %v1556 = vadd.f32 0.0, %v1555
    %v1557 = vpop.f32.mrf.mxu0
    %1558 = vmatprep.mubr.f32.mxu0 0.0
    %v1559 = vand.u32 %v1453, 4294901760
    %v1560 = vsub.f32 %v1453, %v1559
    %v1561 = vand.u32 %v1560, 4294901760
    %v1562 = vsub.f32 %v1560, %v1561
    %v1563 = vand.u32 %v1562, 4294901760
    %1564 = vmatmul.mubr.f32.gmra.mxu0 %v1563
    %v1565 = vpop.f32.mrf.mxu0
    %v1566 = vadd.f32 0.0, %v1565
    %v1567 = vpop.f32.mrf.mxu0
    %1568 = vmatprep.mubr.f32.mxu0 0.0
    %v1569 = vand.u32 %v1456, 4294901760
    %v1570 = vsub.f32 %v1456, %v1569
    %v1571 = vand.u32 %v1570, 4294901760
    %v1572 = vsub.f32 %v1570, %v1571
    %v1573 = vand.u32 %v1572, 4294901760
    %1574 = vmatmul.mubr.f32.gmra.mxu0 %v1573
    %v1575 = vpop.f32.mrf.mxu0
    %v1576 = vadd.f32 0.0, %v1575
    %v1577 = vpop.f32.mrf.mxu0
    %1578 = vmatprep.mubr.f32.mxu0 0.0
    %v1579 = vand.u32 %v1459, 4294901760
    %v1580 = vsub.f32 %v1459, %v1579
    %v1581 = vand.u32 %v1580, 4294901760
    %v1582 = vsub.f32 %v1580, %v1581
    %v1583 = vand.u32 %v1582, 4294901760
    %1584 = vmatmul.mubr.f32.gmra.mxu0 %v1583
    %v1585 = vpop.f32.mrf.mxu0
    %v1586 = vadd.f32 0.0, %v1585
    %v1587 = vpop.f32.mrf.mxu0
    %1588 = vmatprep.mubr.f32.mxu0 0.0
    %v1589 = vand.u32 %v1462, 4294901760
    %v1590 = vsub.f32 %v1462, %v1589
    %v1591 = vand.u32 %v1590, 4294901760
    %v1592 = vsub.f32 %v1590, %v1591
    %v1593 = vand.u32 %v1592, 4294901760
    %1594 = vmatmul.mubr.f32.gmra.mxu0 %v1593
    %v1595 = vpop.f32.mrf.mxu0
    %v1596 = vadd.f32 0.0, %v1595
    %v1597 = vpop.f32.mrf.mxu0
    %1598 = vmatprep.mubr.f32.mxu0 0.0
    %v1599 = vand.u32 %v1465, 4294901760
    %v1600 = vsub.f32 %v1465, %v1599
    %v1601 = vand.u32 %v1600, 4294901760
    %v1602 = vsub.f32 %v1600, %v1601
    %v1603 = vand.u32 %v1602, 4294901760
    %1604 = vmatmul.mubr.f32.gmra.mxu0 %v1603
    %v1605 = vpop.f32.mrf.mxu0
    %v1606 = vadd.f32 0.0, %v1605
    %v1607 = vpop.f32.mrf.mxu0
    %1608 = vmatprep.mubr.f32.mxu0 0.0
    %v1609 = vand.u32 %v1468, 4294901760
    %v1610 = vsub.f32 %v1468, %v1609
    %v1611 = vand.u32 %v1610, 4294901760
    %v1612 = vsub.f32 %v1610, %v1611
    %v1613 = vand.u32 %v1612, 4294901760
    %1614 = vmatmul.mubr.f32.gmra.mxu0 %v1613
    %v1615 = vpop.f32.mrf.mxu0
    %v1616 = vadd.f32 0.0, %v1615
    %v1617 = vpop.f32.mrf.mxu0
    %1618 = vdwg.mxu0
    %1619 = vmatprep.subr.mxu0 0.0
    %1620 = vmatpush1.msra.mxu0 0.0
    %1621 = vmatprep.subr.mxu0 0.0
    %1622 = vmatpush1.msra.mxu0 0.0
    %1623 = vmatprep.subr.mxu0 0.0
    %1624 = vmatpush1.msra.mxu0 0.0
    %1625 = vmatprep.subr.mxu0 0.0
    %1626 = vmatpush1.msra.mxu0 0.0
    %1627 = vmatprep.subr.mxu0 0.0
    %1628 = vmatpush1.msra.mxu0 0.0
    %1629 = vmatprep.subr.mxu0 0.0
    %1630 = vmatpush1.msra.mxu0 0.0
    %1631 = vmatprep.subr.mxu0 0.0
    %1632 = vmatpush1.msra.mxu0 0.0
    %1633 = vmatprep.subr.mxu0 0.0
    %1634 = vmatpush1.msra.mxu0 0.0
    %1635 = vmatprep.subr.mxu0 0.0
    %1636 = vmatpush1.msra.mxu0 0.0
    %1637 = vmatprep.subr.mxu0 0.0
    %1638 = vmatpush1.msra.mxu0 0.0
    %1639 = vmatprep.subr.mxu0 0.0
    %1640 = vmatpush1.msra.mxu0 0.0
    %1641 = vmatprep.subr.mxu0 0.0
    %1642 = vmatpush1.msra.mxu0 0.0
    %1643 = vmatprep.subr.mxu0 0.0
    %v1644 = vand.u32 %v1445, 4294901760
    %v1645 = vsub.f32 %v1445, %v1644
    %v1646 = vand.u32 %v1645, 4294901760
    %v1647 = vsub.f32 %v1645, %v1646
    %v1648 = vand.u32 %v1647, 4294901760
    %1649 = vmatpush1.msra.mxu0 %v1648
    %1650 = vmatprep.subr.mxu0 0.0
    %v1651 = vand.u32 %v1444, 4294901760
    %v1652 = vsub.f32 %v1444, %v1651
    %v1653 = vand.u32 %v1652, 4294901760
    %v1654 = vsub.f32 %v1652, %v1653
    %v1655 = vand.u32 %v1654, 4294901760
    %1656 = vmatpush1.msra.mxu0 %v1655
    %1657 = vmatprep.subr.mxu0 0.0
    %v1658 = vand.u32 %v1443, 4294901760
    %v1659 = vsub.f32 %v1443, %v1658
    %v1660 = vand.u32 %v1659, 4294901760
    %v1661 = vsub.f32 %v1659, %v1660
    %v1662 = vand.u32 %v1661, 4294901760
    %1663 = vmatpush1.msra.mxu0 %v1662
    %1664 = vmatprep.subr.mxu0 0.0
    %v1665 = vand.u32 %v1442, 4294901760
    %v1666 = vsub.f32 %v1442, %v1665
    %v1667 = vand.u32 %v1666, 4294901760
    %v1668 = vsub.f32 %v1666, %v1667
    %v1669 = vand.u32 %v1668, 4294901760
    %1670 = vmatpush1.msra.mxu0 %v1669
    %1671 = vmatprep.subr.mxu0 0.0
    %1672 = vmatpush2.msra.mxu0 0.0
    %1673 = vmatprep.subr.mxu0 0.0
    %1674 = vmatpush2.msra.mxu0 0.0
    %1675 = vmatprep.subr.mxu0 0.0
    %1676 = vmatpush2.msra.mxu0 0.0
    %1677 = vmatprep.subr.mxu0 0.0
    %1678 = vmatpush2.msra.mxu0 0.0
    %1679 = vmatprep.subr.mxu0 0.0
    %1680 = vmatpush2.msra.mxu0 0.0
    %1681 = vmatprep.subr.mxu0 0.0
    %1682 = vmatpush2.msra.mxu0 0.0
    %1683 = vmatprep.subr.mxu0 0.0
    %1684 = vmatpush2.msra.mxu0 0.0
    %1685 = vmatprep.subr.mxu0 0.0
    %1686 = vmatpush2.msra.mxu0 0.0
    %1687 = vmatprep.subr.mxu0 0.0
    %1688 = vmatpush2.msra.mxu0 0.0
    %1689 = vmatprep.subr.mxu0 0.0
    %1690 = vmatpush2.msra.mxu0 0.0
    %1691 = vmatprep.subr.mxu0 0.0
    %1692 = vmatpush2.msra.mxu0 0.0
    %1693 = vmatprep.subr.mxu0 0.0
    %1694 = vmatpush2.msra.mxu0 0.0
    %1695 = vmatprep.subr.mxu0 0.0
    %1696 = vmatpush2.msra.mxu0 0.0
    %1697 = vmatprep.subr.mxu0 0.0
    %1698 = vmatpush2.msra.mxu0 0.0
    %1699 = vmatprep.subr.mxu0 0.0
    %1700 = vmatpush2.msra.mxu0 0.0
    %1701 = vmatprep.subr.mxu0 0.0
    %1702 = vmatpush2.msra.mxu0 0.0
    %1703 = vmatprep.mubr.f32.mxu0 0.0
    %v1704 = vand.u32 %v1447, 4294901760
    %1705 = vmatmul.mubr.f32.gmra.mxu0 %v1704
    %v1706 = vpop.f32.mrf.mxu0
    %v1707 = vadd.f32 %v1546, %v1706
    %v1708 = vpop.f32.mrf.mxu0
    %1709 = vmatprep.mubr.f32.mxu0 0.0
    %v1710 = vand.u32 %v1450, 4294901760
    %1711 = vmatmul.mubr.f32.gmra.mxu0 %v1710
    %v1712 = vpop.f32.mrf.mxu0
    %v1713 = vadd.f32 %v1556, %v1712
    %v1714 = vpop.f32.mrf.mxu0
    %1715 = vmatprep.mubr.f32.mxu0 0.0
    %v1716 = vand.u32 %v1453, 4294901760
    %1717 = vmatmul.mubr.f32.gmra.mxu0 %v1716
    %v1718 = vpop.f32.mrf.mxu0
    %v1719 = vadd.f32 %v1566, %v1718
    %v1720 = vpop.f32.mrf.mxu0
    %1721 = vmatprep.mubr.f32.mxu0 0.0
    %v1722 = vand.u32 %v1456, 4294901760
    %1723 = vmatmul.mubr.f32.gmra.mxu0 %v1722
    %v1724 = vpop.f32.mrf.mxu0
    %v1725 = vadd.f32 %v1576, %v1724
    %v1726 = vpop.f32.mrf.mxu0
    %1727 = vmatprep.mubr.f32.mxu0 0.0
    %v1728 = vand.u32 %v1459, 4294901760
    %1729 = vmatmul.mubr.f32.gmra.mxu0 %v1728
    %v1730 = vpop.f32.mrf.mxu0
    %v1731 = vadd.f32 %v1586, %v1730
    %v1732 = vpop.f32.mrf.mxu0
    %1733 = vmatprep.mubr.f32.mxu0 0.0
    %v1734 = vand.u32 %v1462, 4294901760
    %1735 = vmatmul.mubr.f32.gmra.mxu0 %v1734
    %v1736 = vpop.f32.mrf.mxu0
    %v1737 = vadd.f32 %v1596, %v1736
    %v1738 = vpop.f32.mrf.mxu0
    %1739 = vmatprep.mubr.f32.mxu0 0.0
    %v1740 = vand.u32 %v1465, 4294901760
    %1741 = vmatmul.mubr.f32.gmra.mxu0 %v1740
    %v1742 = vpop.f32.mrf.mxu0
    %v1743 = vadd.f32 %v1606, %v1742
    %v1744 = vpop.f32.mrf.mxu0
    %1745 = vmatprep.mubr.f32.mxu0 0.0
    %v1746 = vand.u32 %v1468, 4294901760
    %1747 = vmatmul.mubr.f32.gmra.mxu0 %v1746
    %v1748 = vpop.f32.mrf.mxu0
    %v1749 = vadd.f32 %v1616, %v1748
    %v1750 = vpop.f32.mrf.mxu0
    %1751 = vdwg.mxu0
    %1752 = vmatprep.subr.mxu0 0.0
    %1753 = vmatpush1.msra.mxu0 0.0
    %1754 = vmatprep.subr.mxu0 0.0
    %1755 = vmatpush1.msra.mxu0 0.0
    %1756 = vmatprep.subr.mxu0 0.0
    %1757 = vmatpush1.msra.mxu0 0.0
    %1758 = vmatprep.subr.mxu0 0.0
    %1759 = vmatpush1.msra.mxu0 0.0
    %1760 = vmatprep.subr.mxu0 0.0
    %1761 = vmatpush1.msra.mxu0 0.0
    %1762 = vmatprep.subr.mxu0 0.0
    %1763 = vmatpush1.msra.mxu0 0.0
    %1764 = vmatprep.subr.mxu0 0.0
    %1765 = vmatpush1.msra.mxu0 0.0
    %1766 = vmatprep.subr.mxu0 0.0
    %1767 = vmatpush1.msra.mxu0 0.0
    %1768 = vmatprep.subr.mxu0 0.0
    %1769 = vmatpush1.msra.mxu0 0.0
    %1770 = vmatprep.subr.mxu0 0.0
    %1771 = vmatpush1.msra.mxu0 0.0
    %1772 = vmatprep.subr.mxu0 0.0
    %1773 = vmatpush1.msra.mxu0 0.0
    %1774 = vmatprep.subr.mxu0 0.0
    %1775 = vmatpush1.msra.mxu0 0.0
    %1776 = vmatprep.subr.mxu0 0.0
    %v1777 = vand.u32 %v1445, 4294901760
    %v1778 = vsub.f32 %v1445, %v1777
    %1779 = vmatpush1.msra.mxu0 %v1778
    %1780 = vmatprep.subr.mxu0 0.0
    %v1781 = vand.u32 %v1444, 4294901760
    %v1782 = vsub.f32 %v1444, %v1781
    %1783 = vmatpush1.msra.mxu0 %v1782
    %1784 = vmatprep.subr.mxu0 0.0
    %v1785 = vand.u32 %v1443, 4294901760
    %v1786 = vsub.f32 %v1443, %v1785
    %1787 = vmatpush1.msra.mxu0 %v1786
    %1788 = vmatprep.subr.mxu0 0.0
    %v1789 = vand.u32 %v1442, 4294901760
    %v1790 = vsub.f32 %v1442, %v1789
    %1791 = vmatpush1.msra.mxu0 %v1790
    %1792 = vmatprep.subr.mxu0 0.0
    %1793 = vmatpush2.msra.mxu0 0.0
    %1794 = vmatprep.subr.mxu0 0.0
    %1795 = vmatpush2.msra.mxu0 0.0
    %1796 = vmatprep.subr.mxu0 0.0
    %1797 = vmatpush2.msra.mxu0 0.0
    %1798 = vmatprep.subr.mxu0 0.0
    %1799 = vmatpush2.msra.mxu0 0.0
    %1800 = vmatprep.subr.mxu0 0.0
    %1801 = vmatpush2.msra.mxu0 0.0
    %1802 = vmatprep.subr.mxu0 0.0
    %1803 = vmatpush2.msra.mxu0 0.0
    %1804 = vmatprep.subr.mxu0 0.0
    %1805 = vmatpush2.msra.mxu0 0.0
    %1806 = vmatprep.subr.mxu0 0.0
    %1807 = vmatpush2.msra.mxu0 0.0
    %1808 = vmatprep.subr.mxu0 0.0
    %1809 = vmatpush2.msra.mxu0 0.0
    %1810 = vmatprep.subr.mxu0 0.0
    %1811 = vmatpush2.msra.mxu0 0.0
    %1812 = vmatprep.subr.mxu0 0.0
    %1813 = vmatpush2.msra.mxu0 0.0
    %1814 = vmatprep.subr.mxu0 0.0
    %1815 = vmatpush2.msra.mxu0 0.0
    %1816 = vmatprep.subr.mxu0 0.0
    %1817 = vmatpush2.msra.mxu0 0.0
    %1818 = vmatprep.subr.mxu0 0.0
    %1819 = vmatpush2.msra.mxu0 0.0
    %1820 = vmatprep.subr.mxu0 0.0
    %1821 = vmatpush2.msra.mxu0 0.0
    %1822 = vmatprep.subr.mxu0 0.0
    %1823 = vmatpush2.msra.mxu0 0.0
    %1824 = vmatprep.mubr.f32.mxu0 0.0
    %v1825 = vand.u32 %v1447, 4294901760
    %v1826 = vsub.f32 %v1447, %v1825
    %1827 = vmatmul.mubr.f32.gmra.mxu0 %v1826
    %v1828 = vpop.f32.mrf.mxu0
    %v1829 = vadd.f32 %v1707, %v1828
    %v1830 = vpop.f32.mrf.mxu0
    %1831 = vmatprep.mubr.f32.mxu0 0.0
    %v1832 = vand.u32 %v1450, 4294901760
    %v1833 = vsub.f32 %v1450, %v1832
    %1834 = vmatmul.mubr.f32.gmra.mxu0 %v1833
    %v1835 = vpop.f32.mrf.mxu0
    %v1836 = vadd.f32 %v1713, %v1835
    %v1837 = vpop.f32.mrf.mxu0
    %1838 = vmatprep.mubr.f32.mxu0 0.0
    %v1839 = vand.u32 %v1453, 4294901760
    %v1840 = vsub.f32 %v1453, %v1839
    %1841 = vmatmul.mubr.f32.gmra.mxu0 %v1840
    %v1842 = vpop.f32.mrf.mxu0
    %v1843 = vadd.f32 %v1719, %v1842
    %v1844 = vpop.f32.mrf.mxu0
    %1845 = vmatprep.mubr.f32.mxu0 0.0
    %v1846 = vand.u32 %v1456, 4294901760
    %v1847 = vsub.f32 %v1456, %v1846
    %1848 = vmatmul.mubr.f32.gmra.mxu0 %v1847
    %v1849 = vpop.f32.mrf.mxu0
    %v1850 = vadd.f32 %v1725, %v1849
    %v1851 = vpop.f32.mrf.mxu0
    %1852 = vmatprep.mubr.f32.mxu0 0.0
    %v1853 = vand.u32 %v1459, 4294901760
    %v1854 = vsub.f32 %v1459, %v1853
    %1855 = vmatmul.mubr.f32.gmra.mxu0 %v1854
    %v1856 = vpop.f32.mrf.mxu0
    %v1857 = vadd.f32 %v1731, %v1856
    %v1858 = vpop.f32.mrf.mxu0
    %1859 = vmatprep.mubr.f32.mxu0 0.0
    %v1860 = vand.u32 %v1462, 4294901760
    %v1861 = vsub.f32 %v1462, %v1860
    %1862 = vmatmul.mubr.f32.gmra.mxu0 %v1861
    %v1863 = vpop.f32.mrf.mxu0
    %v1864 = vadd.f32 %v1737, %v1863
    %v1865 = vpop.f32.mrf.mxu0
    %1866 = vmatprep.mubr.f32.mxu0 0.0
    %v1867 = vand.u32 %v1465, 4294901760
    %v1868 = vsub.f32 %v1465, %v1867
    %1869 = vmatmul.mubr.f32.gmra.mxu0 %v1868
    %v1870 = vpop.f32.mrf.mxu0
    %v1871 = vadd.f32 %v1743, %v1870
    %v1872 = vpop.f32.mrf.mxu0
    %1873 = vmatprep.mubr.f32.mxu0 0.0
    %v1874 = vand.u32 %v1468, 4294901760
    %v1875 = vsub.f32 %v1468, %v1874
    %1876 = vmatmul.mubr.f32.gmra.mxu0 %v1875
    %v1877 = vpop.f32.mrf.mxu0
    %v1878 = vadd.f32 %v1749, %v1877
    %v1879 = vpop.f32.mrf.mxu0
    %1880 = vdwg.mxu0
    %1881 = vmatprep.subr.mxu0 0.0
    %1882 = vmatpush1.msra.mxu0 0.0
    %1883 = vmatprep.subr.mxu0 0.0
    %1884 = vmatpush1.msra.mxu0 0.0
    %1885 = vmatprep.subr.mxu0 0.0
    %1886 = vmatpush1.msra.mxu0 0.0
    %1887 = vmatprep.subr.mxu0 0.0
    %1888 = vmatpush1.msra.mxu0 0.0
    %1889 = vmatprep.subr.mxu0 0.0
    %1890 = vmatpush1.msra.mxu0 0.0
    %1891 = vmatprep.subr.mxu0 0.0
    %1892 = vmatpush1.msra.mxu0 0.0
    %1893 = vmatprep.subr.mxu0 0.0
    %1894 = vmatpush1.msra.mxu0 0.0
    %1895 = vmatprep.subr.mxu0 0.0
    %1896 = vmatpush1.msra.mxu0 0.0
    %1897 = vmatprep.subr.mxu0 0.0
    %1898 = vmatpush1.msra.mxu0 0.0
    %1899 = vmatprep.subr.mxu0 0.0
    %1900 = vmatpush1.msra.mxu0 0.0
    %1901 = vmatprep.subr.mxu0 0.0
    %1902 = vmatpush1.msra.mxu0 0.0
    %1903 = vmatprep.subr.mxu0 0.0
    %1904 = vmatpush1.msra.mxu0 0.0
    %1905 = vmatprep.subr.mxu0 0.0
    %v1906 = vand.u32 %v1445, 4294901760
    %1907 = vmatpush1.msra.mxu0 %v1906
    %1908 = vmatprep.subr.mxu0 0.0
    %v1909 = vand.u32 %v1444, 4294901760
    %1910 = vmatpush1.msra.mxu0 %v1909
    %1911 = vmatprep.subr.mxu0 0.0
    %v1912 = vand.u32 %v1443, 4294901760
    %1913 = vmatpush1.msra.mxu0 %v1912
    %1914 = vmatprep.subr.mxu0 0.0
    %v1915 = vand.u32 %v1442, 4294901760
    %1916 = vmatpush1.msra.mxu0 %v1915
    %1917 = vmatprep.subr.mxu0 0.0
    %1918 = vmatpush2.msra.mxu0 0.0
    %1919 = vmatprep.subr.mxu0 0.0
    %1920 = vmatpush2.msra.mxu0 0.0
    %1921 = vmatprep.subr.mxu0 0.0
    %1922 = vmatpush2.msra.mxu0 0.0
    %1923 = vmatprep.subr.mxu0 0.0
    %1924 = vmatpush2.msra.mxu0 0.0
    %1925 = vmatprep.subr.mxu0 0.0
    %1926 = vmatpush2.msra.mxu0 0.0
    %1927 = vmatprep.subr.mxu0 0.0
    %1928 = vmatpush2.msra.mxu0 0.0
    %1929 = vmatprep.subr.mxu0 0.0
    %1930 = vmatpush2.msra.mxu0 0.0
    %1931 = vmatprep.subr.mxu0 0.0
    %1932 = vmatpush2.msra.mxu0 0.0
    %1933 = vmatprep.subr.mxu0 0.0
    %1934 = vmatpush2.msra.mxu0 0.0
    %1935 = vmatprep.subr.mxu0 0.0
    %1936 = vmatpush2.msra.mxu0 0.0
    %1937 = vmatprep.subr.mxu0 0.0
    %1938 = vmatpush2.msra.mxu0 0.0
    %1939 = vmatprep.subr.mxu0 0.0
    %1940 = vmatpush2.msra.mxu0 0.0
    %1941 = vmatprep.subr.mxu0 0.0
    %1942 = vmatpush2.msra.mxu0 0.0
    %1943 = vmatprep.subr.mxu0 0.0
    %1944 = vmatpush2.msra.mxu0 0.0
    %1945 = vmatprep.subr.mxu0 0.0
    %1946 = vmatpush2.msra.mxu0 0.0
    %1947 = vmatprep.subr.mxu0 0.0
    %1948 = vmatpush2.msra.mxu0 0.0
    %1949 = vmatprep.mubr.f32.mxu0 0.0
    %v1950 = vand.u32 %v1447, 4294901760
    %v1951 = vsub.f32 %v1447, %v1950
    %v1952 = vand.u32 %v1951, 4294901760
    %1953 = vmatmul.mubr.f32.gmra.mxu0 %v1952
    %v1954 = vpop.f32.mrf.mxu0
    %v1955 = vadd.f32 %v1829, %v1954
    %v1956 = vpop.f32.mrf.mxu0
    %1957 = vmatprep.mubr.f32.mxu0 0.0
    %v1958 = vand.u32 %v1450, 4294901760
    %v1959 = vsub.f32 %v1450, %v1958
    %v1960 = vand.u32 %v1959, 4294901760
    %1961 = vmatmul.mubr.f32.gmra.mxu0 %v1960
    %v1962 = vpop.f32.mrf.mxu0
    %v1963 = vadd.f32 %v1836, %v1962
    %v1964 = vpop.f32.mrf.mxu0
    %1965 = vmatprep.mubr.f32.mxu0 0.0
    %v1966 = vand.u32 %v1453, 4294901760
    %v1967 = vsub.f32 %v1453, %v1966
    %v1968 = vand.u32 %v1967, 4294901760
    %1969 = vmatmul.mubr.f32.gmra.mxu0 %v1968
    %v1970 = vpop.f32.mrf.mxu0
    %v1971 = vadd.f32 %v1843, %v1970
    %v1972 = vpop.f32.mrf.mxu0
    %1973 = vmatprep.mubr.f32.mxu0 0.0
    %v1974 = vand.u32 %v1456, 4294901760
    %v1975 = vsub.f32 %v1456, %v1974
    %v1976 = vand.u32 %v1975, 4294901760
    %1977 = vmatmul.mubr.f32.gmra.mxu0 %v1976
    %v1978 = vpop.f32.mrf.mxu0
    %v1979 = vadd.f32 %v1850, %v1978
    %v1980 = vpop.f32.mrf.mxu0
    %1981 = vmatprep.mubr.f32.mxu0 0.0
    %v1982 = vand.u32 %v1459, 4294901760
    %v1983 = vsub.f32 %v1459, %v1982
    %v1984 = vand.u32 %v1983, 4294901760
    %1985 = vmatmul.mubr.f32.gmra.mxu0 %v1984
    %v1986 = vpop.f32.mrf.mxu0
    %v1987 = vadd.f32 %v1857, %v1986
    %v1988 = vpop.f32.mrf.mxu0
    %1989 = vmatprep.mubr.f32.mxu0 0.0
    %v1990 = vand.u32 %v1462, 4294901760
    %v1991 = vsub.f32 %v1462, %v1990
    %v1992 = vand.u32 %v1991, 4294901760
    %1993 = vmatmul.mubr.f32.gmra.mxu0 %v1992
    %v1994 = vpop.f32.mrf.mxu0
    %v1995 = vadd.f32 %v1864, %v1994
    %v1996 = vpop.f32.mrf.mxu0
    %1997 = vmatprep.mubr.f32.mxu0 0.0
    %v1998 = vand.u32 %v1465, 4294901760
    %v1999 = vsub.f32 %v1465, %v1998
    %v2000 = vand.u32 %v1999, 4294901760
    %2001 = vmatmul.mubr.f32.gmra.mxu0 %v2000
    %v2002 = vpop.f32.mrf.mxu0
    %v2003 = vadd.f32 %v1871, %v2002
    %v2004 = vpop.f32.mrf.mxu0
    %2005 = vmatprep.mubr.f32.mxu0 0.0
    %v2006 = vand.u32 %v1468, 4294901760
    %v2007 = vsub.f32 %v1468, %v2006
    %v2008 = vand.u32 %v2007, 4294901760
    %2009 = vmatmul.mubr.f32.gmra.mxu0 %v2008
    %v2010 = vpop.f32.mrf.mxu0
    %v2011 = vadd.f32 %v1878, %v2010
    %v2012 = vpop.f32.mrf.mxu0
    %2013 = vdwg.mxu0
    %2014 = vmatprep.subr.mxu0 0.0
    %2015 = vmatpush1.msra.mxu0 0.0
    %2016 = vmatprep.subr.mxu0 0.0
    %2017 = vmatpush1.msra.mxu0 0.0
    %2018 = vmatprep.subr.mxu0 0.0
    %2019 = vmatpush1.msra.mxu0 0.0
    %2020 = vmatprep.subr.mxu0 0.0
    %2021 = vmatpush1.msra.mxu0 0.0
    %2022 = vmatprep.subr.mxu0 0.0
    %2023 = vmatpush1.msra.mxu0 0.0
    %2024 = vmatprep.subr.mxu0 0.0
    %2025 = vmatpush1.msra.mxu0 0.0
    %2026 = vmatprep.subr.mxu0 0.0
    %2027 = vmatpush1.msra.mxu0 0.0
    %2028 = vmatprep.subr.mxu0 0.0
    %2029 = vmatpush1.msra.mxu0 0.0
    %2030 = vmatprep.subr.mxu0 0.0
    %2031 = vmatpush1.msra.mxu0 0.0
    %2032 = vmatprep.subr.mxu0 0.0
    %2033 = vmatpush1.msra.mxu0 0.0
    %2034 = vmatprep.subr.mxu0 0.0
    %2035 = vmatpush1.msra.mxu0 0.0
    %2036 = vmatprep.subr.mxu0 0.0
    %2037 = vmatpush1.msra.mxu0 0.0
    %2038 = vmatprep.subr.mxu0 0.0
    %v2039 = vand.u32 %v1445, 4294901760
    %v2040 = vsub.f32 %v1445, %v2039
    %v2041 = vand.u32 %v2040, 4294901760
    %2042 = vmatpush1.msra.mxu0 %v2041
    %2043 = vmatprep.subr.mxu0 0.0
    %v2044 = vand.u32 %v1444, 4294901760
    %v2045 = vsub.f32 %v1444, %v2044
    %v2046 = vand.u32 %v2045, 4294901760
    %2047 = vmatpush1.msra.mxu0 %v2046
    %2048 = vmatprep.subr.mxu0 0.0
    %v2049 = vand.u32 %v1443, 4294901760
    %v2050 = vsub.f32 %v1443, %v2049
    %v2051 = vand.u32 %v2050, 4294901760
    %2052 = vmatpush1.msra.mxu0 %v2051
    %2053 = vmatprep.subr.mxu0 0.0
    %v2054 = vand.u32 %v1442, 4294901760
    %v2055 = vsub.f32 %v1442, %v2054
    %v2056 = vand.u32 %v2055, 4294901760
    %2057 = vmatpush1.msra.mxu0 %v2056
    %2058 = vmatprep.subr.mxu0 0.0
    %2059 = vmatpush2.msra.mxu0 0.0
    %2060 = vmatprep.subr.mxu0 0.0
    %2061 = vmatpush2.msra.mxu0 0.0
    %2062 = vmatprep.subr.mxu0 0.0
    %2063 = vmatpush2.msra.mxu0 0.0
    %2064 = vmatprep.subr.mxu0 0.0
    %2065 = vmatpush2.msra.mxu0 0.0
    %2066 = vmatprep.subr.mxu0 0.0
    %2067 = vmatpush2.msra.mxu0 0.0
    %2068 = vmatprep.subr.mxu0 0.0
    %2069 = vmatpush2.msra.mxu0 0.0
    %2070 = vmatprep.subr.mxu0 0.0
    %2071 = vmatpush2.msra.mxu0 0.0
    %2072 = vmatprep.subr.mxu0 0.0
    %2073 = vmatpush2.msra.mxu0 0.0
    %2074 = vmatprep.subr.mxu0 0.0
    %2075 = vmatpush2.msra.mxu0 0.0
    %2076 = vmatprep.subr.mxu0 0.0
    %2077 = vmatpush2.msra.mxu0 0.0
    %2078 = vmatprep.subr.mxu0 0.0
    %2079 = vmatpush2.msra.mxu0 0.0
    %2080 = vmatprep.subr.mxu0 0.0
    %2081 = vmatpush2.msra.mxu0 0.0
    %2082 = vmatprep.subr.mxu0 0.0
    %2083 = vmatpush2.msra.mxu0 0.0
    %2084 = vmatprep.subr.mxu0 0.0
    %2085 = vmatpush2.msra.mxu0 0.0
    %2086 = vmatprep.subr.mxu0 0.0
    %2087 = vmatpush2.msra.mxu0 0.0
    %2088 = vmatprep.subr.mxu0 0.0
    %2089 = vmatpush2.msra.mxu0 0.0
    %2090 = vmatprep.mubr.f32.mxu0 0.0
    %v2091 = vand.u32 %v1447, 4294901760
    %2092 = vmatmul.mubr.f32.gmra.mxu0 %v2091
    %v2093 = vpop.f32.mrf.mxu0
    %v2094 = vadd.f32 %v1955, %v2093
    %v2095 = vpop.f32.mrf.mxu0
    %2096 = vmatprep.mubr.f32.mxu0 0.0
    %v2097 = vand.u32 %v1450, 4294901760
    %2098 = vmatmul.mubr.f32.gmra.mxu0 %v2097
    %v2099 = vpop.f32.mrf.mxu0
    %v2100 = vadd.f32 %v1963, %v2099
    %v2101 = vpop.f32.mrf.mxu0
    %2102 = vmatprep.mubr.f32.mxu0 0.0
    %v2103 = vand.u32 %v1453, 4294901760
    %2104 = vmatmul.mubr.f32.gmra.mxu0 %v2103
    %v2105 = vpop.f32.mrf.mxu0
    %v2106 = vadd.f32 %v1971, %v2105
    %v2107 = vpop.f32.mrf.mxu0
    %2108 = vmatprep.mubr.f32.mxu0 0.0
    %v2109 = vand.u32 %v1456, 4294901760
    %2110 = vmatmul.mubr.f32.gmra.mxu0 %v2109
    %v2111 = vpop.f32.mrf.mxu0
    %v2112 = vadd.f32 %v1979, %v2111
    %v2113 = vpop.f32.mrf.mxu0
    %2114 = vmatprep.mubr.f32.mxu0 0.0
    %v2115 = vand.u32 %v1459, 4294901760
    %2116 = vmatmul.mubr.f32.gmra.mxu0 %v2115
    %v2117 = vpop.f32.mrf.mxu0
    %v2118 = vadd.f32 %v1987, %v2117
    %v2119 = vpop.f32.mrf.mxu0
    %2120 = vmatprep.mubr.f32.mxu0 0.0
    %v2121 = vand.u32 %v1462, 4294901760
    %2122 = vmatmul.mubr.f32.gmra.mxu0 %v2121
    %v2123 = vpop.f32.mrf.mxu0
    %v2124 = vadd.f32 %v1995, %v2123
    %v2125 = vpop.f32.mrf.mxu0
    %2126 = vmatprep.mubr.f32.mxu0 0.0
    %v2127 = vand.u32 %v1465, 4294901760
    %2128 = vmatmul.mubr.f32.gmra.mxu0 %v2127
    %v2129 = vpop.f32.mrf.mxu0
    %v2130 = vadd.f32 %v2003, %v2129
    %v2131 = vpop.f32.mrf.mxu0
    %2132 = vmatprep.mubr.f32.mxu0 0.0
    %v2133 = vand.u32 %v1468, 4294901760
    %2134 = vmatmul.mubr.f32.gmra.mxu0 %v2133
    %v2135 = vpop.f32.mrf.mxu0
    %v2136 = vadd.f32 %v2011, %v2135
    %v2137 = vpop.f32.mrf.mxu0
    %2138 = vdwg.mxu0
    %2139 = vmatprep.subr.mxu0 0.0
    %2140 = vmatpush1.msra.mxu0 0.0
    %2141 = vmatprep.subr.mxu0 0.0
    %2142 = vmatpush1.msra.mxu0 0.0
    %2143 = vmatprep.subr.mxu0 0.0
    %2144 = vmatpush1.msra.mxu0 0.0
    %2145 = vmatprep.subr.mxu0 0.0
    %2146 = vmatpush1.msra.mxu0 0.0
    %2147 = vmatprep.subr.mxu0 0.0
    %2148 = vmatpush1.msra.mxu0 0.0
    %2149 = vmatprep.subr.mxu0 0.0
    %2150 = vmatpush1.msra.mxu0 0.0
    %2151 = vmatprep.subr.mxu0 0.0
    %2152 = vmatpush1.msra.mxu0 0.0
    %2153 = vmatprep.subr.mxu0 0.0
    %2154 = vmatpush1.msra.mxu0 0.0
    %2155 = vmatprep.subr.mxu0 0.0
    %2156 = vmatpush1.msra.mxu0 0.0
    %2157 = vmatprep.subr.mxu0 0.0
    %2158 = vmatpush1.msra.mxu0 0.0
    %2159 = vmatprep.subr.mxu0 0.0
    %2160 = vmatpush1.msra.mxu0 0.0
    %2161 = vmatprep.subr.mxu0 0.0
    %2162 = vmatpush1.msra.mxu0 0.0
    %2163 = vmatprep.subr.mxu0 0.0
    %v2164 = vand.u32 %v1445, 4294901760
    %2165 = vmatpush1.msra.mxu0 %v2164
    %2166 = vmatprep.subr.mxu0 0.0
    %v2167 = vand.u32 %v1444, 4294901760
    %2168 = vmatpush1.msra.mxu0 %v2167
    %2169 = vmatprep.subr.mxu0 0.0
    %v2170 = vand.u32 %v1443, 4294901760
    %2171 = vmatpush1.msra.mxu0 %v2170
    %2172 = vmatprep.subr.mxu0 0.0
    %v2173 = vand.u32 %v1442, 4294901760
    %2174 = vmatpush1.msra.mxu0 %v2173
    %2175 = vmatprep.subr.mxu0 0.0
    %2176 = vmatpush2.msra.mxu0 0.0
    %2177 = vmatprep.subr.mxu0 0.0
    %2178 = vmatpush2.msra.mxu0 0.0
    %2179 = vmatprep.subr.mxu0 0.0
    %2180 = vmatpush2.msra.mxu0 0.0
    %2181 = vmatprep.subr.mxu0 0.0
    %2182 = vmatpush2.msra.mxu0 0.0
    %2183 = vmatprep.subr.mxu0 0.0
    %2184 = vmatpush2.msra.mxu0 0.0
    %2185 = vmatprep.subr.mxu0 0.0
    %2186 = vmatpush2.msra.mxu0 0.0
    %2187 = vmatprep.subr.mxu0 0.0
    %2188 = vmatpush2.msra.mxu0 0.0
    %2189 = vmatprep.subr.mxu0 0.0
    %2190 = vmatpush2.msra.mxu0 0.0
    %2191 = vmatprep.subr.mxu0 0.0
    %2192 = vmatpush2.msra.mxu0 0.0
    %2193 = vmatprep.subr.mxu0 0.0
    %2194 = vmatpush2.msra.mxu0 0.0
    %2195 = vmatprep.subr.mxu0 0.0
    %2196 = vmatpush2.msra.mxu0 0.0
    %2197 = vmatprep.subr.mxu0 0.0
    %2198 = vmatpush2.msra.mxu0 0.0
    %2199 = vmatprep.subr.mxu0 0.0
    %2200 = vmatpush2.msra.mxu0 0.0
    %2201 = vmatprep.subr.mxu0 0.0
    %2202 = vmatpush2.msra.mxu0 0.0
    %2203 = vmatprep.subr.mxu0 0.0
    %2204 = vmatpush2.msra.mxu0 0.0
    %2205 = vmatprep.subr.mxu0 0.0
    %2206 = vmatpush2.msra.mxu0 0.0
    %2207 = vmatprep.mubr.f32.mxu0 0.0
    %v2208 = vand.u32 %v1447, 4294901760
    %2209 = vmatmul.mubr.f32.gmra.mxu0 %v2208
    %v2210 = vpop.f32.mrf.mxu0
    %v2211 = vadd.f32 %v2094, %v2210
    %v2212 = vpop.f32.mrf.mxu0
    %2213 = vmatprep.mubr.f32.mxu0 0.0
    %v2214 = vand.u32 %v1450, 4294901760
    %2215 = vmatmul.mubr.f32.gmra.mxu0 %v2214
    %v2216 = vpop.f32.mrf.mxu0
    %v2217 = vadd.f32 %v2100, %v2216
    %v2218 = vpop.f32.mrf.mxu0
    %2219 = vmatprep.mubr.f32.mxu0 0.0
    %v2220 = vand.u32 %v1453, 4294901760
    %2221 = vmatmul.mubr.f32.gmra.mxu0 %v2220
    %v2222 = vpop.f32.mrf.mxu0
    %v2223 = vadd.f32 %v2106, %v2222
    %v2224 = vpop.f32.mrf.mxu0
    %2225 = vmatprep.mubr.f32.mxu0 0.0
    %v2226 = vand.u32 %v1456, 4294901760
    %2227 = vmatmul.mubr.f32.gmra.mxu0 %v2226
    %v2228 = vpop.f32.mrf.mxu0
    %v2229 = vadd.f32 %v2112, %v2228
    %v2230 = vpop.f32.mrf.mxu0
    %2231 = vmatprep.mubr.f32.mxu0 0.0
    %v2232 = vand.u32 %v1459, 4294901760
    %2233 = vmatmul.mubr.f32.gmra.mxu0 %v2232
    %v2234 = vpop.f32.mrf.mxu0
    %v2235 = vadd.f32 %v2118, %v2234
    %v2236 = vpop.f32.mrf.mxu0
    %2237 = vmatprep.mubr.f32.mxu0 0.0
    %v2238 = vand.u32 %v1462, 4294901760
    %2239 = vmatmul.mubr.f32.gmra.mxu0 %v2238
    %v2240 = vpop.f32.mrf.mxu0
    %v2241 = vadd.f32 %v2124, %v2240
    %v2242 = vpop.f32.mrf.mxu0
    %2243 = vmatprep.mubr.f32.mxu0 0.0
    %v2244 = vand.u32 %v1465, 4294901760
    %2245 = vmatmul.mubr.f32.gmra.mxu0 %v2244
    %v2246 = vpop.f32.mrf.mxu0
    %v2247 = vadd.f32 %v2130, %v2246
    %v2248 = vpop.f32.mrf.mxu0
    %2249 = vmatprep.mubr.f32.mxu0 0.0
    %v2250 = vand.u32 %v1468, 4294901760
    %2251 = vmatmul.mubr.f32.gmra.mxu0 %v2250
    %v2252 = vpop.f32.mrf.mxu0
    %v2253 = vadd.f32 %v2136, %v2252
    %v2254 = vpop.f32.mrf.mxu0
    %2255 = vdwg.mxu0
    %2264 = vset.pattern.permute.xlu0 0
    %2265 = vperm.xlu0 %2264, %v2211
    %v2266 = vpop.permute.xlu0 %2265
    %2267 = vset.pattern.permute.xlu0 0
    %2268 = vperm.xlu0 %2267, %v2217
    %v2269 = vpop.permute.xlu0 %2268
    %2270 = vset.pattern.permute.xlu0 0
    %2271 = vperm.xlu0 %2270, %v2223
    %v2272 = vpop.permute.xlu0 %2271
    %2273 = vset.pattern.permute.xlu0 0
    %2274 = vperm.xlu0 %2273, %v2229
    %v2275 = vpop.permute.xlu0 %2274
    %2276 = vset.pattern.permute.xlu0 0
    %2277 = vperm.xlu0 %2276, %v2235
    %v2278 = vpop.permute.xlu0 %2277
    %2279 = vset.pattern.permute.xlu0 0
    %2280 = vperm.xlu0 %2279, %v2241
    %v2281 = vpop.permute.xlu0 %2280
    %2282 = vset.pattern.permute.xlu0 0
    %2283 = vperm.xlu0 %2282, %v2247
    %v2284 = vpop.permute.xlu0 %2283
    %2285 = vset.pattern.permute.xlu0 0
    %2286 = vperm.xlu0 %2285, %v2253
    %v2287 = vpop.permute.xlu0 %2286
    %v2288 = vlaneseq
    %v2289 = vand.u32 %v2288, 127
    %v2290 = vlaneseq
    %v2291 = vshrl.u32 %v2290, 7
    %v2292 = vsub.s32 %v2289, %v2291
    %v2293 = vrot.slane %v2266, %v2292
    %v2294 = vlaneseq
    %v2295 = vshrl.u32 %v2294, 7
    %v2296 = vsub.s32 %v2289, %v2295
    %v2297 = vrot.slane %v2269, %v2296
    %v2298 = vlaneseq
    %v2299 = vshrl.u32 %v2298, 7
    %v2300 = vsub.s32 %v2289, %v2299
    %v2301 = vrot.slane %v2272, %v2300
    %v2302 = vlaneseq
    %v2303 = vshrl.u32 %v2302, 7
    %v2304 = vsub.s32 %v2289, %v2303
    %v2305 = vrot.slane %v2275, %v2304
    %v2306 = vlaneseq
    %v2307 = vshrl.u32 %v2306, 7
    %v2308 = vsub.s32 %v2289, %v2307
    %v2309 = vrot.slane %v2278, %v2308
    %v2310 = vlaneseq
    %v2311 = vshrl.u32 %v2310, 7
    %v2312 = vsub.s32 %v2289, %v2311
    %v2313 = vrot.slane %v2281, %v2312
    %v2314 = vlaneseq
    %v2315 = vshrl.u32 %v2314, 7
    %v2316 = vsub.s32 %v2289, %v2315
    %v2317 = vrot.slane %v2284, %v2316
    %v2318 = vlaneseq
    %v2319 = vshrl.u32 %v2318, 7
    %v2320 = vsub.s32 %v2289, %v2319
    %v2321 = vrot.slane %v2287, %v2320
    %vm2322 = vcmask 1041409
    %v2323 = vsel %vm2322, %v2297, %v2293
    %vm2324 = vcmask 1042434
    %v2325 = vsel %vm2324, %v2301, %v2323
    %vm2326 = vcmask 1043459
    %v2327 = vsel %vm2326, %v2305, %v2325
    %vm2328 = vcmask 1044484
    %v2329 = vsel %vm2328, %v2309, %v2327
    %vm2330 = vcmask 1045509
    %v2331 = vsel %vm2330, %v2313, %v2329
    %vm2332 = vcmask 1046534
    %v2333 = vsel %vm2332, %v2317, %v2331
    %vm2334 = vcmask 1047559
    %v2335 = vsel %vm2334, %v2321, %v2333
    %2337 = vxpose.xlu0.b32.start [1/16] %v2335, 128
    %2338 = vxpose.xlu0.b32.cont [2/16] 0.0, 128
    %2339 = vxpose.xlu0.b32.cont [3/16] 0.0, 128
    %2340 = vxpose.xlu0.b32.cont [4/16] 0.0, 128
    %2341 = vxpose.xlu0.b32.cont [5/16] 0.0, 128
    %2342 = vxpose.xlu0.b32.cont [6/16] 0.0, 128
    %2343 = vxpose.xlu0.b32.cont [7/16] 0.0, 128
    %2344 = vxpose.xlu0.b32.cont [8/16] 0.0, 128
    %2345 = vxpose.xlu0.b32.cont [9/16] 0.0, 128
    %2346 = vxpose.xlu0.b32.cont [10/16] 0.0, 128
    %2347 = vxpose.xlu0.b32.cont [11/16] 0.0, 128
    %2348 = vxpose.xlu0.b32.cont [12/16] 0.0, 128
    %2349 = vxpose.xlu0.b32.cont [13/16] 0.0, 128
    %2350 = vxpose.xlu0.b32.cont [14/16] 0.0, 128
    %2351 = vxpose.xlu0.b32.cont [15/16] 0.0, 128
    %2352 = vxpose.xlu0.b32.end [16/16] 0.0, 128
    %v2353 = vpop.trf.xlu0
    %v2354 = vpop.trf.xlu0
    %v2355 = vpop.trf.xlu0
    %v2356 = vpop.trf.xlu0
    %v2357 = vpop.trf.xlu0
    %v2358 = vpop.trf.xlu0
    %v2359 = vpop.trf.xlu0
    %v2360 = vpop.trf.xlu0
    %v2361 = vpop.trf.xlu0
    %v2362 = vpop.trf.xlu0
    %v2363 = vpop.trf.xlu0
    %v2364 = vpop.trf.xlu0
    %v2365 = vpop.trf.xlu0
    %v2366 = vpop.trf.xlu0
    %v2367 = vpop.trf.xlu0
    %v2368 = vpop.trf.xlu0
    %vm2369 = vcmask 64512
    %v2370 = vsel %vm2369, %v2353, 0.0
    %v2371 = vld [vmem:[%s6] sm:$0xff]
    %vm2372 = vcmp.ne.s32.totalorder %v2371, 0
    %v2373 = vsel %vm2372, %v2370, -1e+10
    %vm2374 = vcmp.lt.s32.totalorder %v2289, 8
    %v2375 = vsel %vm2374, %v2373, -3e+38
    %2376 = vmax.xlane.f32.xlu0 %v2375
    %v2377 = vpop.xlane.xlu0 %2376
    %v2378 = vsub.f32 %v2375, %v2377
    %v2379 = vmul.f32 %v2378, 1.442695
    %v2380 = vpow.pop %v2379
    %2381 = vadd.xlane.f32.xlu0 %v2380
    %v2382 = vpop.xlane.xlu0 %2381
    %v2383 = vrcp.pop %v2382
    %v2384 = vmul.f32 %v2380, %v2383
    %2385 = vst [vmem:[#allocation10] sm:$0xff] %v2384
    // Predicated region
    $region46: #{tpu_custom_call.1} parent=1 // pred_check
      _
    $region47: #{tpu_custom_call.1} parent=1 // pred_check_branch
      %2387 = sbr.rel (0) target = $region49
    $region48: #{tpu_custom_call.1} parent=1 // pred_region
      %s2389 = ssub.s32 128, 128
      %2390 = vsyncadd [#allocation4], %s2389
      %s2392 = sshll.u32 [#allocation10], 4
      %s2393 = int_to_ptr.vmem [resolvable:$true] %s2392
      %2395 = dma.vmem_to_hbm [thread:$0]  %s2393, 128, %s7, [#allocation4]
    $region49: #{tpu_custom_call.1} parent=1 // pred_fallthru
      _
    // Predicated region
    $region50: #{tpu_custom_call.1} parent=1 // pred_check
      _
    $region51: #{tpu_custom_call.1} parent=1 // pred_check_branch
      %2397 = sbr.rel (0) target = $region53
    $region52: #{tpu_custom_call.1} parent=1 // pred_region
      %2398 = dma.done [#allocation4], 128
    $region53: #{tpu_custom_call.1} parent=1 // pred_fallthru
      _
    %2399 = vsyncpa [#allocation3], 1
    %2400 = vsyncpa [#allocation6], 1
    %2401 = vsyncpa [#allocation9], 1
    %2402 = vsyncpa [#allocation4], 1

</llo_original>
